<compile_context>
chip_gen: v7x
topology: tpu7x:2x2x1
jax: 0.10.0
libtpu: 0.0.40
codegen_flags: <defaults>
</compile_context>

<pallas_src>
import jax
import jax.numpy as jnp
from jax import lax
from jax.experimental import pallas as pl
from jax.experimental.pallas import tpu as pltpu


# --------------------------------------------------------------------------------------
# Pallas kernel: variance volume -> cost -> softmax -> depth / confidence
# --------------------------------------------------------------------------------------
def _depthnet_kernel(src_ref, ref_ref, a_ref, b2_ref, bias_ref, dv_ref,
                     prob_ref, depth_ref, conf_ref):
    n_src, c, d, hwt = src_ref.shape

    # ---- channel-fused variance cost volume + 1x1x1 conv (C -> 1) ----
    cost = jnp.zeros((d, hwt), jnp.float32)
    for ch in range(c):                                       # static unroll, small C
        r = ref_ref[pl.ds(ch, 1), :].astype(jnp.float32)      # (1, HWT) reference row
        x0 = src_ref[0, ch].astype(jnp.float32)               # (D, HWT)
        s, sq = x0, x0 * x0
        for i in range(1, n_src):                             # static unroll over views
            xi = src_ref[i, ch].astype(jnp.float32)
            s = s + xi
            sq = sq + xi * xi
        sum_tot = s + r                                       # ref folds in lazily: no
        sq_tot = sq + r * r                                   # explicit broadcast_to
        # w*var = (w/V)*sq_tot - (w/V^2)*sum_tot^2  (1/V pre-folded host-side)
        cost = cost + a_ref[ch] * sq_tot - b2_ref[ch] * (sum_tot * sum_tot)
    cost = cost + bias_ref[0]

    # ---- softmax over the depth axis (EUP reciprocal, not a (D,HWT) divide) ----
    m = jnp.max(cost, axis=0, keepdims=True)
    e = jnp.exp(cost - m)
    inv = pl.reciprocal(jnp.sum(e, axis=0, keepdims=True), approx=True)
    p = e * inv                                               # (D, HWT)
    prob_ref[...] = p.astype(prob_ref.dtype)

    # ---- depth regression:  sum_d p[d] * depth_values[d] ----
    dv = dv_ref[...]                                          # (D, 1)
    depth_ref[...] = jnp.sum(p * dv, axis=0, keepdims=True).astype(depth_ref.dtype)

    # ---- photometric confidence: winner index then single masked reduction ----
    # gather(4*avg_pool3d(pad(p,(1,2)),(4,1,1)), idx) == sum_{d in [idx-1, idx+2]} p[d]
    row = lax.broadcasted_iota(jnp.int32, (d, hwt), 0)        # reused as f32 iota below
    idx_f = jnp.sum(p * row.astype(jnp.float32), axis=0, keepdims=True)   # (1, HWT)
    # .long() truncates toward zero; expectation is non-negative so astype matches.
    idx = jnp.clip(idx_f.astype(jnp.int32), 0, d - 1)
    in_win = (row >= idx - 1) & (row <= idx + 2)
    conf = jnp.sum(jnp.where(in_win, p, 0.0), axis=0, keepdims=True)
    conf_ref[...] = conf.astype(conf_ref.dtype)


# --------------------------------------------------------------------------------------
# VMEM budgeting / spatial-tile selection
# --------------------------------------------------------------------------------------
def _vmem_capacity_bytes():
    cap = 64 * 1024 * 1024
    try:
        info = pltpu.get_tpu_info()
        cap = int(getattr(info, "vmem_capacity_bytes", cap)) or cap
    except Exception:
        pass
    return cap


def _vmem_estimate(n_src, c, d, hw_tile, in_itemsize):
    blk_in = 2 * (n_src * c * d + c) * hw_tile * in_itemsize   # double-buffered inputs
    blk_out = 2 * (d + 2) * hw_tile * 4                         # double-buffered outputs
    temps = 8 * d * hw_tile * 4                                 # in-kernel f32 temporaries
    return blk_in + blk_out + temps


def _pick_hw_tile(hw, target, est_fn, budget):
    """Largest multiple of 128 that divides hw, is <= target and fits the VMEM budget."""
    if hw % 128 != 0:
        return hw                                   # fall back to full-extent block
    target = max(128, min(target, hw))
    cands = [t for t in range(128, target + 1, 128) if hw % t == 0]
    for t in reversed(cands):
        if est_fn(t) <= budget:
            return t
    return cands[0]


def depthnet_pallas(src_stack, ref_fea, conv_w, conv_b, depth_values,
                    hw_tile_target=None):
    """src_stack: (V-1, B, C, D, HW) warped source volumes (bf16/f32).
       ref_fea:   (B, C, HW) reference feature (bf16/f32)."""
    n_src, b, c, d, hw = src_stack.shape
    v = n_src + 1
    itemsize = jnp.dtype(src_stack.dtype).itemsize

    cap = _vmem_capacity_bytes()
    budget = (cap * 3) // 4                          # headroom for Mosaic internal scratch
    if hw_tile_target is None:                       # chip-aware default tile target
        hw_tile_target = 512 if cap <= 64 * 1024 * 1024 else 1024

    est = lambda t: _vmem_estimate(n_src, c, d, t, itemsize)
    hw_tile = _pick_hw_tile(hw, hw_tile_target, est, budget)
    vmem_limit = int(min(budget, max(32 * 1024 * 1024, est(hw_tile) + (8 << 20))))

    # 1/V pre-folded into the 1x1x1 conv weights (review item #3).
    a1 = (conv_w.reshape(c) / v).astype(jnp.float32)          # w / V
    b2 = (conv_w.reshape(c) / (v * v)).astype(jnp.float32)    # w / V^2
    bias = conv_b.reshape(1).astype(jnp.float32)
    dv = depth_values.reshape(b, d, 1).astype(jnp.float32)

    call = pl.pallas_call(
        _depthnet_kernel,
        out_shape=(
            jax.ShapeDtypeStruct((b, d, hw), jnp.float32),    # prob_volume
            jax.ShapeDtypeStruct((b, 1, hw), jnp.float32),    # depth
            jax.ShapeDtypeStruct((b, 1, hw), jnp.float32),    # photometric_confidence
        ),
        grid_spec=pltpu.PrefetchScalarGridSpec(
            num_scalar_prefetch=0,
            # Spatial tiles lead so the megacore split lands on the big axis at B=1.
            grid=(hw // hw_tile, b),
            in_specs=[
                # warped source volumes: batch squeezed, spatial tiled
                pl.BlockSpec((n_src, None, c, d, hw_tile),
                             lambda ti, bi: (0, bi, 0, 0, ti)),
                # reference feature (not depth-broadcast on the host)
                pl.BlockSpec((None, c, hw_tile), lambda ti, bi: (bi, 0, ti)),
                # pre-folded conv weights / bias as SMEM scalars
                pl.BlockSpec((c,), lambda ti, bi: (0,),
                             memory_space=pltpu.MemorySpace.SMEM),
                pl.BlockSpec((c,), lambda ti, bi: (0,),
                             memory_space=pltpu.MemorySpace.SMEM),
                pl.BlockSpec((1,), lambda ti, bi: (0,),
                             memory_space=pltpu.MemorySpace.SMEM),
                # per-batch depth hypotheses
                pl.BlockSpec((None, d, 1), lambda ti, bi: (bi, 0, 0)),
            ],
            out_specs=(
                pl.BlockSpec((None, d, hw_tile), lambda ti, bi: (bi, 0, ti)),
                pl.BlockSpec((None, 1, hw_tile), lambda ti, bi: (bi, 0, ti)),
                pl.BlockSpec((None, 1, hw_tile), lambda ti, bi: (bi, 0, ti)),
            ),
        ),
        compiler_params=pltpu.CompilerParams(
            dimension_semantics=("parallel", "parallel"),
            vmem_limit_bytes=vmem_limit,
        ),
    )
    return call(src_stack, ref_fea, a1, b2, bias, dv)


# --------------------------------------------------------------------------------------
# Plain-JAX glue: homography warp (grid_sample) and projection-matrix composition
# --------------------------------------------------------------------------------------
def _grid_sample_bilinear_zeros(img, grid):
    # img: (B, C, H, W); grid: (B, Ho, Wo, 2) normalized (x, y); align_corners=False.
    bsz, ch, h, w = img.shape
    gx, gy = grid[..., 0], grid[..., 1]
    ix = (gx + 1.0) * w * 0.5 - 0.5
    iy = (gy + 1.0) * h * 0.5 - 0.5
    ix0, iy0 = jnp.floor(ix), jnp.floor(iy)
    ix1, iy1 = ix0 + 1.0, iy0 + 1.0
    wx1, wy1 = ix - ix0, iy - iy0
    wx0, wy0 = 1.0 - wx1, 1.0 - wy1
    flat = img.reshape(bsz, ch, h * w)

    def corner(xc, yc, wgt):
        valid = (xc >= 0) & (xc <= w - 1) & (yc >= 0) & (yc <= h - 1)
        xi = jnp.clip(xc, 0, w - 1).astype(jnp.int32)
        yi = jnp.clip(yc, 0, h - 1).astype(jnp.int32)
        lin = (yi * w + xi).reshape(bsz, 1, -1)
        vals = jnp.take_along_axis(flat, lin, axis=2).reshape(bsz, ch, *xc.shape[1:])
        return vals * (wgt * valid.astype(img.dtype))[:, None]

    return (corner(ix0, iy0, wx0 * wy0) + corner(ix1, iy0, wx1 * wy0) +
            corner(ix0, iy1, wx0 * wy1) + corner(ix1, iy1, wx1 * wy1))


def homo_warping_jax(src_fea, src_proj, ref_proj, depth_values):
    # TODO(synk): bilinear grid_sample is a data-dependent gather; kept in plain JAX.
    bsz, ch, h, w = src_fea.shape
    d = depth_values.shape[1]
    proj = jnp.matmul(src_proj, jnp.linalg.inv(ref_proj))
    rot, trans = proj[:, :3, :3], proj[:, :3, 3:4]
    yy, xx = jnp.meshgrid(jnp.arange(h, dtype=jnp.float32),
                          jnp.arange(w, dtype=jnp.float32), indexing="ij")
    xyz = jnp.stack([xx.reshape(-1), yy.reshape(-1), jnp.ones(h * w, jnp.float32)], axis=0)
    rot_xyz = jnp.matmul(rot, xyz[None])                                  # (B, 3, HW)
    rot_depth_xyz = rot_xyz[:, :, None, :] * depth_values[:, None, :, None]
    proj_xyz = rot_depth_xyz + trans[:, :, :, None]                       # (B, 3, D, HW)
    proj_xy = proj_xyz[:, :2] / proj_xyz[:, 2:3]
    # Matches the PyTorch reference exactly: (W-1)/2 normalization, align_corners=False.
    px = proj_xy[:, 0] / ((w - 1) / 2.0) - 1.0
    py = proj_xy[:, 1] / ((h - 1) / 2.0) - 1.0
    grid = jnp.stack([px, py], axis=-1)                                   # (B, D, HW, 2)
    warped = _grid_sample_bilinear_zeros(src_fea, grid.reshape(bsz, d * h, w, 2))
    return warped.reshape(bsz, ch, d, h, w)                               # (B, C, D, H, W)


def depthnet_forward(features, proj_matrices, depth_values, num_depth, conv_w, conv_b,
                     hw_tile_target=None, stream_dtype=jnp.bfloat16):
    v = len(features)
    assert proj_matrices.shape[1] == v, "Different number of images and projection matrices"
    assert depth_values.shape[1] == num_depth
    assert v >= 2, "need at least one source view"
    bsz, ch, h, w = features[0].shape
    d, hw = num_depth, h * w

    def compose(p):  # p: (B, 2, 4, 4) -> intrinsics @ extrinsics in top 3x4
        top = jnp.matmul(p[:, 1, :3, :3], p[:, 0, :3, :4])
        return p[:, 0].at[:, :3, :4].set(top)

    ref_proj = compose(proj_matrices[:, 0])

    # Reference feature streamed once (kernel broadcasts over depth internally).
    ref_fea = features[0].reshape(bsz, ch, hw).astype(stream_dtype)       # (B, C, HW)

    # Warped source volumes come out in (B, C, D, H, W): reshape only, stream bf16.
    src_vols = []
    for i in range(1, v):
        src_proj = compose(proj_matrices[:, i])
        warped = homo_warping_jax(features[i], src_proj, ref_proj, depth_values)
        src_vols.append(warped.reshape(bsz, ch, d, hw).astype(stream_dtype))
    src_stack = jnp.stack(src_vols, axis=0)                               # (V-1, B, C, D, HW)

    prob, depth, conf = depthnet_pallas(src_stack, ref_fea, conv_w, conv_b,
                                        depth_values, hw_tile_target=hw_tile_target)
    return {
        "depth": depth.reshape(bsz, h, w),
        "photometric_confidence": conf.reshape(bsz, h, w),
        "prob_volume": prob.reshape(bsz, d, h, w),
        "depth_values": depth_values,
    }


# --------------------------------------------------------------------------------------
if __name__ == "__main__":
    key = jax.random.PRNGKey(0)
    B, C, H, W, D, V = 2, 8, 16, 16, 8, 3

    feats = [jax.random.normal(jax.random.fold_in(key, i), (B, C, H, W), jnp.float32)
             for i in range(V)]

    # Deterministic, well-conditioned projection matrices: [extrinsics, intrinsics] per view.
    intr = jnp.eye(4, dtype=jnp.float32)
    intr = intr.at[0, 0].set(8.0).at[1, 1].set(8.0).at[0, 2].set(W / 2.0).at[1, 2].set(H / 2.0)
    per_view = []
    for i in range(V):
        extr = jnp.eye(4, dtype=jnp.float32).at[0, 3].set(0.1 * i).at[1, 3].set(-0.05 * i)
        per_view.append(jnp.stack([extr, intr], axis=0))                  # (2, 4, 4)
    proj_matrices = jnp.broadcast_to(jnp.stack(per_view, axis=0)[None], (B, V, 2, 4, 4))

    depth_values = jnp.broadcast_to(
        jnp.linspace(1.0, 4.0, D, dtype=jnp.float32)[None], (B, D))
    depth_values = depth_values + 0.1 * jnp.arange(B, dtype=jnp.float32)[:, None]

    # Deterministic cost_regularization parameters (1x1x1 conv C -> 1).
    conv_w = (jnp.arange(C, dtype=jnp.float32) + 1.0) / C * 0.1
    conv_b = jnp.array([0.05], dtype=jnp.float32)

    # hw_tile_target=128 exercises the spatial tiling path (HW=256 -> 2 tiles per batch).
    out = depthnet_forward(feats, proj_matrices, depth_values, D, conv_w, conv_b,
                           hw_tile_target=128)
    jax.block_until_ready(out)
    assert out["depth"].shape == (B, H, W)
    assert out["photometric_confidence"].shape == (B, H, W)
    assert out["prob_volume"].shape == (B, D, H, W)
    assert bool(jnp.all(jnp.isfinite(out["depth"])))
    assert bool(jnp.all(jnp.isfinite(out["photometric_confidence"])))
    assert bool(jnp.all(jnp.isfinite(out["prob_volume"])))
    print("KERNEL_OK")
</pallas_src>

<mosaic_0001>
module attributes {stable_mosaic.version = 11 : i64} {
  func.func @_depthnet_kernel(%arg0: i32, %arg1: i32, %arg2: memref<2x1x8x8x128xbf16, #tpu.memory_space<vmem>>, %arg3: memref<1x8x128xbf16, #tpu.memory_space<vmem>>, %arg4: memref<8xf32, #tpu.memory_space<smem>>, %arg5: memref<8xf32, #tpu.memory_space<smem>>, %arg6: memref<1xf32, #tpu.memory_space<smem>>, %arg7: memref<1x8x1xf32, #tpu.memory_space<vmem>>, %arg8: memref<1x8x128xf32, #tpu.memory_space<vmem>>, %arg9: memref<1x1x128xf32, #tpu.memory_space<vmem>>, %arg10: memref<1x1x128xf32, #tpu.memory_space<vmem>>) attributes {dimension_semantics = [#tpu.dimension_semantics<parallel>, #tpu.dimension_semantics<parallel>], iteration_bounds = array<i64: 2, 2>, scalar_prefetch = 0 : i64, scratch_operands = 0 : i64, tpu.core_type = #tpu.core_type<tc>, window_params = [{transform_indices = @transform_0, window_bounds = array<i64: 2, 1, 8, 8, 128>}, {transform_indices = @transform_1, window_bounds = array<i64: 1, 8, 128>}, {transform_indices = @transform_2, window_bounds = array<i64: 8>}, {transform_indices = @transform_3, window_bounds = array<i64: 8>}, {transform_indices = @transform_4, window_bounds = array<i64: 1>}, {transform_indices = @transform_5, window_bounds = array<i64: 1, 8, 1>}, {transform_indices = @transform_6, window_bounds = array<i64: 1, 8, 128>}, {transform_indices = @transform_7, window_bounds = array<i64: 1, 1, 128>}, {transform_indices = @transform_8, window_bounds = array<i64: 1, 1, 128>}]} {
    %cst = arith.constant 0.000000e+00 : f32
    %0 = vector.broadcast %cst : f32 to vector<8x128xf32>
    %c0 = arith.constant 0 : index
    %c0_0 = arith.constant 0 : index
    %c0_1 = arith.constant 0 : index
    %1 = vector.load %arg3[%c0, %c0_0, %c0_1] : memref<1x8x128xbf16, #tpu.memory_space<vmem>>, vector<1x1x128xbf16>
    %2 = vector.shape_cast %1 : vector<1x1x128xbf16> to vector<1x128xbf16>
    %3 = arith.extf %2 : vector<1x128xbf16> to vector<1x128xf32>
    %c0_2 = arith.constant 0 : index
    %c0_3 = arith.constant 0 : index
    %c0_4 = arith.constant 0 : index
    %c0_5 = arith.constant 0 : index
    %c0_6 = arith.constant 0 : index
    %4 = vector.load %arg2[%c0_2, %c0_3, %c0_4, %c0_5, %c0_6] : memref<2x1x8x8x128xbf16, #tpu.memory_space<vmem>>, vector<1x1x1x8x128xbf16>
    %5 = vector.shape_cast %4 : vector<1x1x1x8x128xbf16> to vector<8x128xbf16>
    %6 = arith.extf %5 : vector<8x128xbf16> to vector<8x128xf32>
    %7 = arith.mulf %6, %6 : vector<8x128xf32>
    %c1 = arith.constant 1 : index
    %c0_7 = arith.constant 0 : index
    %c0_8 = arith.constant 0 : index
    %c0_9 = arith.constant 0 : index
    %c0_10 = arith.constant 0 : index
    %8 = vector.load %arg2[%c1, %c0_7, %c0_8, %c0_9, %c0_10] : memref<2x1x8x8x128xbf16, #tpu.memory_space<vmem>>, vector<1x1x1x8x128xbf16>
    %9 = vector.shape_cast %8 : vector<1x1x1x8x128xbf16> to vector<8x128xbf16>
    %10 = arith.extf %9 : vector<8x128xbf16> to vector<8x128xf32>
    %11 = arith.addf %6, %10 : vector<8x128xf32>
    %12 = arith.mulf %10, %10 : vector<8x128xf32>
    %13 = arith.addf %7, %12 : vector<8x128xf32>
    %14 = vector.broadcast %3 : vector<1x128xf32> to vector<8x128xf32>
    %15 = arith.addf %11, %14 : vector<8x128xf32>
    %16 = arith.mulf %3, %3 : vector<1x128xf32>
    %17 = vector.broadcast %16 : vector<1x128xf32> to vector<8x128xf32>
    %18 = arith.addf %13, %17 : vector<8x128xf32>
    %c0_11 = arith.constant 0 : index
    %19 = memref.load %arg4[%c0_11] : memref<8xf32, #tpu.memory_space<smem>>
    %20 = vector.broadcast %19 : f32 to vector<8x128xf32>
    %21 = arith.mulf %20, %18 : vector<8x128xf32>
    %22 = arith.addf %0, %21 : vector<8x128xf32>
    %c0_12 = arith.constant 0 : index
    %23 = memref.load %arg5[%c0_12] : memref<8xf32, #tpu.memory_space<smem>>
    %24 = arith.mulf %15, %15 : vector<8x128xf32>
    %25 = vector.broadcast %23 : f32 to vector<8x128xf32>
    %26 = arith.mulf %25, %24 : vector<8x128xf32>
    %27 = arith.subf %22, %26 : vector<8x128xf32>
    %c0_13 = arith.constant 0 : index
    %c1_14 = arith.constant 1 : index
    %c0_15 = arith.constant 0 : index
    %28 = vector.load %arg3[%c0_13, %c1_14, %c0_15] : memref<1x8x128xbf16, #tpu.memory_space<vmem>>, vector<1x1x128xbf16>
    %29 = vector.shape_cast %28 : vector<1x1x128xbf16> to vector<1x128xbf16>
    %30 = arith.extf %29 : vector<1x128xbf16> to vector<1x128xf32>
    %c0_16 = arith.constant 0 : index
    %c0_17 = arith.constant 0 : index
    %c1_18 = arith.constant 1 : index
    %c0_19 = arith.constant 0 : index
    %c0_20 = arith.constant 0 : index
    %31 = vector.load %arg2[%c0_16, %c0_17, %c1_18, %c0_19, %c0_20] : memref<2x1x8x8x128xbf16, #tpu.memory_space<vmem>>, vector<1x1x1x8x128xbf16>
    %32 = vector.shape_cast %31 : vector<1x1x1x8x128xbf16> to vector<8x128xbf16>
    %33 = arith.extf %32 : vector<8x128xbf16> to vector<8x128xf32>
    %34 = arith.mulf %33, %33 : vector<8x128xf32>
    %c1_21 = arith.constant 1 : index
    %c0_22 = arith.constant 0 : index
    %c1_23 = arith.constant 1 : index
    %c0_24 = arith.constant 0 : index
    %c0_25 = arith.constant 0 : index
    %35 = vector.load %arg2[%c1_21, %c0_22, %c1_23, %c0_24, %c0_25] : memref<2x1x8x8x128xbf16, #tpu.memory_space<vmem>>, vector<1x1x1x8x128xbf16>
    %36 = vector.shape_cast %35 : vector<1x1x1x8x128xbf16> to vector<8x128xbf16>
    %37 = arith.extf %36 : vector<8x128xbf16> to vector<8x128xf32>
    %38 = arith.addf %33, %37 : vector<8x128xf32>
    %39 = arith.mulf %37, %37 : vector<8x128xf32>
    %40 = arith.addf %34, %39 : vector<8x128xf32>
    %41 = vector.broadcast %30 : vector<1x128xf32> to vector<8x128xf32>
    %42 = arith.addf %38, %41 : vector<8x128xf32>
    %43 = arith.mulf %30, %30 : vector<1x128xf32>
    %44 = vector.broadcast %43 : vector<1x128xf32> to vector<8x128xf32>
    %45 = arith.addf %40, %44 : vector<8x128xf32>
    %c1_26 = arith.constant 1 : index
    %46 = memref.load %arg4[%c1_26] : memref<8xf32, #tpu.memory_space<smem>>
    %47 = vector.broadcast %46 : f32 to vector<8x128xf32>
    %48 = arith.mulf %47, %45 : vector<8x128xf32>
    %49 = arith.addf %27, %48 : vector<8x128xf32>
    %c1_27 = arith.constant 1 : index
    %50 = memref.load %arg5[%c1_27] : memref<8xf32, #tpu.memory_space<smem>>
    %51 = arith.mulf %42, %42 : vector<8x128xf32>
    %52 = vector.broadcast %50 : f32 to vector<8x128xf32>
    %53 = arith.mulf %52, %51 : vector<8x128xf32>
    %54 = arith.subf %49, %53 : vector<8x128xf32>
    %c0_28 = arith.constant 0 : index
    %c2 = arith.constant 2 : index
    %c0_29 = arith.constant 0 : index
    %55 = vector.load %arg3[%c0_28, %c2, %c0_29] : memref<1x8x128xbf16, #tpu.memory_space<vmem>>, vector<1x1x128xbf16>
    %56 = vector.shape_cast %55 : vector<1x1x128xbf16> to vector<1x128xbf16>
    %57 = arith.extf %56 : vector<1x128xbf16> to vector<1x128xf32>
    %c0_30 = arith.constant 0 : index
    %c0_31 = arith.constant 0 : index
    %c2_32 = arith.constant 2 : index
    %c0_33 = arith.constant 0 : index
    %c0_34 = arith.constant 0 : index
    %58 = vector.load %arg2[%c0_30, %c0_31, %c2_32, %c0_33, %c0_34] : memref<2x1x8x8x128xbf16, #tpu.memory_space<vmem>>, vector<1x1x1x8x128xbf16>
    %59 = vector.shape_cast %58 : vector<1x1x1x8x128xbf16> to vector<8x128xbf16>
    %60 = arith.extf %59 : vector<8x128xbf16> to vector<8x128xf32>
    %61 = arith.mulf %60, %60 : vector<8x128xf32>
    %c1_35 = arith.constant 1 : index
    %c0_36 = arith.constant 0 : index
    %c2_37 = arith.constant 2 : index
    %c0_38 = arith.constant 0 : index
    %c0_39 = arith.constant 0 : index
    %62 = vector.load %arg2[%c1_35, %c0_36, %c2_37, %c0_38, %c0_39] : memref<2x1x8x8x128xbf16, #tpu.memory_space<vmem>>, vector<1x1x1x8x128xbf16>
    %63 = vector.shape_cast %62 : vector<1x1x1x8x128xbf16> to vector<8x128xbf16>
    %64 = arith.extf %63 : vector<8x128xbf16> to vector<8x128xf32>
    %65 = arith.addf %60, %64 : vector<8x128xf32>
    %66 = arith.mulf %64, %64 : vector<8x128xf32>
    %67 = arith.addf %61, %66 : vector<8x128xf32>
    %68 = vector.broadcast %57 : vector<1x128xf32> to vector<8x128xf32>
    %69 = arith.addf %65, %68 : vector<8x128xf32>
    %70 = arith.mulf %57, %57 : vector<1x128xf32>
    %71 = vector.broadcast %70 : vector<1x128xf32> to vector<8x128xf32>
    %72 = arith.addf %67, %71 : vector<8x128xf32>
    %c2_40 = arith.constant 2 : index
    %73 = memref.load %arg4[%c2_40] : memref<8xf32, #tpu.memory_space<smem>>
    %74 = vector.broadcast %73 : f32 to vector<8x128xf32>
    %75 = arith.mulf %74, %72 : vector<8x128xf32>
    %76 = arith.addf %54, %75 : vector<8x128xf32>
    %c2_41 = arith.constant 2 : index
    %77 = memref.load %arg5[%c2_41] : memref<8xf32, #tpu.memory_space<smem>>
    %78 = arith.mulf %69, %69 : vector<8x128xf32>
    %79 = vector.broadcast %77 : f32 to vector<8x128xf32>
    %80 = arith.mulf %79, %78 : vector<8x128xf32>
    %81 = arith.subf %76, %80 : vector<8x128xf32>
    %c0_42 = arith.constant 0 : index
    %c3 = arith.constant 3 : index
    %c0_43 = arith.constant 0 : index
    %82 = vector.load %arg3[%c0_42, %c3, %c0_43] : memref<1x8x128xbf16, #tpu.memory_space<vmem>>, vector<1x1x128xbf16>
    %83 = vector.shape_cast %82 : vector<1x1x128xbf16> to vector<1x128xbf16>
    %84 = arith.extf %83 : vector<1x128xbf16> to vector<1x128xf32>
    %c0_44 = arith.constant 0 : index
    %c0_45 = arith.constant 0 : index
    %c3_46 = arith.constant 3 : index
    %c0_47 = arith.constant 0 : index
    %c0_48 = arith.constant 0 : index
    %85 = vector.load %arg2[%c0_44, %c0_45, %c3_46, %c0_47, %c0_48] : memref<2x1x8x8x128xbf16, #tpu.memory_space<vmem>>, vector<1x1x1x8x128xbf16>
    %86 = vector.shape_cast %85 : vector<1x1x1x8x128xbf16> to vector<8x128xbf16>
    %87 = arith.extf %86 : vector<8x128xbf16> to vector<8x128xf32>
    %88 = arith.mulf %87, %87 : vector<8x128xf32>
    %c1_49 = arith.constant 1 : index
    %c0_50 = arith.constant 0 : index
    %c3_51 = arith.constant 3 : index
    %c0_52 = arith.constant 0 : index
    %c0_53 = arith.constant 0 : index
    %89 = vector.load %arg2[%c1_49, %c0_50, %c3_51, %c0_52, %c0_53] : memref<2x1x8x8x128xbf16, #tpu.memory_space<vmem>>, vector<1x1x1x8x128xbf16>
    %90 = vector.shape_cast %89 : vector<1x1x1x8x128xbf16> to vector<8x128xbf16>
    %91 = arith.extf %90 : vector<8x128xbf16> to vector<8x128xf32>
    %92 = arith.addf %87, %91 : vector<8x128xf32>
    %93 = arith.mulf %91, %91 : vector<8x128xf32>
    %94 = arith.addf %88, %93 : vector<8x128xf32>
    %95 = vector.broadcast %84 : vector<1x128xf32> to vector<8x128xf32>
    %96 = arith.addf %92, %95 : vector<8x128xf32>
    %97 = arith.mulf %84, %84 : vector<1x128xf32>
    %98 = vector.broadcast %97 : vector<1x128xf32> to vector<8x128xf32>
    %99 = arith.addf %94, %98 : vector<8x128xf32>
    %c3_54 = arith.constant 3 : index
    %100 = memref.load %arg4[%c3_54] : memref<8xf32, #tpu.memory_space<smem>>
    %101 = vector.broadcast %100 : f32 to vector<8x128xf32>
    %102 = arith.mulf %101, %99 : vector<8x128xf32>
    %103 = arith.addf %81, %102 : vector<8x128xf32>
    %c3_55 = arith.constant 3 : index
    %104 = memref.load %arg5[%c3_55] : memref<8xf32, #tpu.memory_space<smem>>
    %105 = arith.mulf %96, %96 : vector<8x128xf32>
    %106 = vector.broadcast %104 : f32 to vector<8x128xf32>
    %107 = arith.mulf %106, %105 : vector<8x128xf32>
    %108 = arith.subf %103, %107 : vector<8x128xf32>
    %c0_56 = arith.constant 0 : index
    %c4 = arith.constant 4 : index
    %c0_57 = arith.constant 0 : index
    %109 = vector.load %arg3[%c0_56, %c4, %c0_57] : memref<1x8x128xbf16, #tpu.memory_space<vmem>>, vector<1x1x128xbf16>
    %110 = vector.shape_cast %109 : vector<1x1x128xbf16> to vector<1x128xbf16>
    %111 = arith.extf %110 : vector<1x128xbf16> to vector<1x128xf32>
    %c0_58 = arith.constant 0 : index
    %c0_59 = arith.constant 0 : index
    %c4_60 = arith.constant 4 : index
    %c0_61 = arith.constant 0 : index
    %c0_62 = arith.constant 0 : index
    %112 = vector.load %arg2[%c0_58, %c0_59, %c4_60, %c0_61, %c0_62] : memref<2x1x8x8x128xbf16, #tpu.memory_space<vmem>>, vector<1x1x1x8x128xbf16>
    %113 = vector.shape_cast %112 : vector<1x1x1x8x128xbf16> to vector<8x128xbf16>
    %114 = arith.extf %113 : vector<8x128xbf16> to vector<8x128xf32>
    %115 = arith.mulf %114, %114 : vector<8x128xf32>
    %c1_63 = arith.constant 1 : index
    %c0_64 = arith.constant 0 : index
    %c4_65 = arith.constant 4 : index
    %c0_66 = arith.constant 0 : index
    %c0_67 = arith.constant 0 : index
    %116 = vector.load %arg2[%c1_63, %c0_64, %c4_65, %c0_66, %c0_67] : memref<2x1x8x8x128xbf16, #tpu.memory_space<vmem>>, vector<1x1x1x8x128xbf16>
    %117 = vector.shape_cast %116 : vector<1x1x1x8x128xbf16> to vector<8x128xbf16>
    %118 = arith.extf %117 : vector<8x128xbf16> to vector<8x128xf32>
    %119 = arith.addf %114, %118 : vector<8x128xf32>
    %120 = arith.mulf %118, %118 : vector<8x128xf32>
    %121 = arith.addf %115, %120 : vector<8x128xf32>
    %122 = vector.broadcast %111 : vector<1x128xf32> to vector<8x128xf32>
    %123 = arith.addf %119, %122 : vector<8x128xf32>
    %124 = arith.mulf %111, %111 : vector<1x128xf32>
    %125 = vector.broadcast %124 : vector<1x128xf32> to vector<8x128xf32>
    %126 = arith.addf %121, %125 : vector<8x128xf32>
    %c4_68 = arith.constant 4 : index
    %127 = memref.load %arg4[%c4_68] : memref<8xf32, #tpu.memory_space<smem>>
    %128 = vector.broadcast %127 : f32 to vector<8x128xf32>
    %129 = arith.mulf %128, %126 : vector<8x128xf32>
    %130 = arith.addf %108, %129 : vector<8x128xf32>
    %c4_69 = arith.constant 4 : index
    %131 = memref.load %arg5[%c4_69] : memref<8xf32, #tpu.memory_space<smem>>
    %132 = arith.mulf %123, %123 : vector<8x128xf32>
    %133 = vector.broadcast %131 : f32 to vector<8x128xf32>
    %134 = arith.mulf %133, %132 : vector<8x128xf32>
    %135 = arith.subf %130, %134 : vector<8x128xf32>
    %c0_70 = arith.constant 0 : index
    %c5 = arith.constant 5 : index
    %c0_71 = arith.constant 0 : index
    %136 = vector.load %arg3[%c0_70, %c5, %c0_71] : memref<1x8x128xbf16, #tpu.memory_space<vmem>>, vector<1x1x128xbf16>
    %137 = vector.shape_cast %136 : vector<1x1x128xbf16> to vector<1x128xbf16>
    %138 = arith.extf %137 : vector<1x128xbf16> to vector<1x128xf32>
    %c0_72 = arith.constant 0 : index
    %c0_73 = arith.constant 0 : index
    %c5_74 = arith.constant 5 : index
    %c0_75 = arith.constant 0 : index
    %c0_76 = arith.constant 0 : index
    %139 = vector.load %arg2[%c0_72, %c0_73, %c5_74, %c0_75, %c0_76] : memref<2x1x8x8x128xbf16, #tpu.memory_space<vmem>>, vector<1x1x1x8x128xbf16>
    %140 = vector.shape_cast %139 : vector<1x1x1x8x128xbf16> to vector<8x128xbf16>
    %141 = arith.extf %140 : vector<8x128xbf16> to vector<8x128xf32>
    %142 = arith.mulf %141, %141 : vector<8x128xf32>
    %c1_77 = arith.constant 1 : index
    %c0_78 = arith.constant 0 : index
    %c5_79 = arith.constant 5 : index
    %c0_80 = arith.constant 0 : index
    %c0_81 = arith.constant 0 : index
    %143 = vector.load %arg2[%c1_77, %c0_78, %c5_79, %c0_80, %c0_81] : memref<2x1x8x8x128xbf16, #tpu.memory_space<vmem>>, vector<1x1x1x8x128xbf16>
    %144 = vector.shape_cast %143 : vector<1x1x1x8x128xbf16> to vector<8x128xbf16>
    %145 = arith.extf %144 : vector<8x128xbf16> to vector<8x128xf32>
    %146 = arith.addf %141, %145 : vector<8x128xf32>
    %147 = arith.mulf %145, %145 : vector<8x128xf32>
    %148 = arith.addf %142, %147 : vector<8x128xf32>
    %149 = vector.broadcast %138 : vector<1x128xf32> to vector<8x128xf32>
    %150 = arith.addf %146, %149 : vector<8x128xf32>
    %151 = arith.mulf %138, %138 : vector<1x128xf32>
    %152 = vector.broadcast %151 : vector<1x128xf32> to vector<8x128xf32>
    %153 = arith.addf %148, %152 : vector<8x128xf32>
    %c5_82 = arith.constant 5 : index
    %154 = memref.load %arg4[%c5_82] : memref<8xf32, #tpu.memory_space<smem>>
    %155 = vector.broadcast %154 : f32 to vector<8x128xf32>
    %156 = arith.mulf %155, %153 : vector<8x128xf32>
    %157 = arith.addf %135, %156 : vector<8x128xf32>
    %c5_83 = arith.constant 5 : index
    %158 = memref.load %arg5[%c5_83] : memref<8xf32, #tpu.memory_space<smem>>
    %159 = arith.mulf %150, %150 : vector<8x128xf32>
    %160 = vector.broadcast %158 : f32 to vector<8x128xf32>
    %161 = arith.mulf %160, %159 : vector<8x128xf32>
    %162 = arith.subf %157, %161 : vector<8x128xf32>
    %c0_84 = arith.constant 0 : index
    %c6 = arith.constant 6 : index
    %c0_85 = arith.constant 0 : index
    %163 = vector.load %arg3[%c0_84, %c6, %c0_85] : memref<1x8x128xbf16, #tpu.memory_space<vmem>>, vector<1x1x128xbf16>
    %164 = vector.shape_cast %163 : vector<1x1x128xbf16> to vector<1x128xbf16>
    %165 = arith.extf %164 : vector<1x128xbf16> to vector<1x128xf32>
    %c0_86 = arith.constant 0 : index
    %c0_87 = arith.constant 0 : index
    %c6_88 = arith.constant 6 : index
    %c0_89 = arith.constant 0 : index
    %c0_90 = arith.constant 0 : index
    %166 = vector.load %arg2[%c0_86, %c0_87, %c6_88, %c0_89, %c0_90] : memref<2x1x8x8x128xbf16, #tpu.memory_space<vmem>>, vector<1x1x1x8x128xbf16>
    %167 = vector.shape_cast %166 : vector<1x1x1x8x128xbf16> to vector<8x128xbf16>
    %168 = arith.extf %167 : vector<8x128xbf16> to vector<8x128xf32>
    %169 = arith.mulf %168, %168 : vector<8x128xf32>
    %c1_91 = arith.constant 1 : index
    %c0_92 = arith.constant 0 : index
    %c6_93 = arith.constant 6 : index
    %c0_94 = arith.constant 0 : index
    %c0_95 = arith.constant 0 : index
    %170 = vector.load %arg2[%c1_91, %c0_92, %c6_93, %c0_94, %c0_95] : memref<2x1x8x8x128xbf16, #tpu.memory_space<vmem>>, vector<1x1x1x8x128xbf16>
    %171 = vector.shape_cast %170 : vector<1x1x1x8x128xbf16> to vector<8x128xbf16>
    %172 = arith.extf %171 : vector<8x128xbf16> to vector<8x128xf32>
    %173 = arith.addf %168, %172 : vector<8x128xf32>
    %174 = arith.mulf %172, %172 : vector<8x128xf32>
    %175 = arith.addf %169, %174 : vector<8x128xf32>
    %176 = vector.broadcast %165 : vector<1x128xf32> to vector<8x128xf32>
    %177 = arith.addf %173, %176 : vector<8x128xf32>
    %178 = arith.mulf %165, %165 : vector<1x128xf32>
    %179 = vector.broadcast %178 : vector<1x128xf32> to vector<8x128xf32>
    %180 = arith.addf %175, %179 : vector<8x128xf32>
    %c6_96 = arith.constant 6 : index
    %181 = memref.load %arg4[%c6_96] : memref<8xf32, #tpu.memory_space<smem>>
    %182 = vector.broadcast %181 : f32 to vector<8x128xf32>
    %183 = arith.mulf %182, %180 : vector<8x128xf32>
    %184 = arith.addf %162, %183 : vector<8x128xf32>
    %c6_97 = arith.constant 6 : index
    %185 = memref.load %arg5[%c6_97] : memref<8xf32, #tpu.memory_space<smem>>
    %186 = arith.mulf %177, %177 : vector<8x128xf32>
    %187 = vector.broadcast %185 : f32 to vector<8x128xf32>
    %188 = arith.mulf %187, %186 : vector<8x128xf32>
    %189 = arith.subf %184, %188 : vector<8x128xf32>
    %c0_98 = arith.constant 0 : index
    %c7 = arith.constant 7 : index
    %c0_99 = arith.constant 0 : index
    %190 = vector.load %arg3[%c0_98, %c7, %c0_99] : memref<1x8x128xbf16, #tpu.memory_space<vmem>>, vector<1x1x128xbf16>
    %191 = vector.shape_cast %190 : vector<1x1x128xbf16> to vector<1x128xbf16>
    %192 = arith.extf %191 : vector<1x128xbf16> to vector<1x128xf32>
    %c0_100 = arith.constant 0 : index
    %c0_101 = arith.constant 0 : index
    %c7_102 = arith.constant 7 : index
    %c0_103 = arith.constant 0 : index
    %c0_104 = arith.constant 0 : index
    %193 = vector.load %arg2[%c0_100, %c0_101, %c7_102, %c0_103, %c0_104] : memref<2x1x8x8x128xbf16, #tpu.memory_space<vmem>>, vector<1x1x1x8x128xbf16>
    %194 = vector.shape_cast %193 : vector<1x1x1x8x128xbf16> to vector<8x128xbf16>
    %195 = arith.extf %194 : vector<8x128xbf16> to vector<8x128xf32>
    %196 = arith.mulf %195, %195 : vector<8x128xf32>
    %c1_105 = arith.constant 1 : index
    %c0_106 = arith.constant 0 : index
    %c7_107 = arith.constant 7 : index
    %c0_108 = arith.constant 0 : index
    %c0_109 = arith.constant 0 : index
    %197 = vector.load %arg2[%c1_105, %c0_106, %c7_107, %c0_108, %c0_109] : memref<2x1x8x8x128xbf16, #tpu.memory_space<vmem>>, vector<1x1x1x8x128xbf16>
    %198 = vector.shape_cast %197 : vector<1x1x1x8x128xbf16> to vector<8x128xbf16>
    %199 = arith.extf %198 : vector<8x128xbf16> to vector<8x128xf32>
    %200 = arith.addf %195, %199 : vector<8x128xf32>
    %201 = arith.mulf %199, %199 : vector<8x128xf32>
    %202 = arith.addf %196, %201 : vector<8x128xf32>
    %203 = vector.broadcast %192 : vector<1x128xf32> to vector<8x128xf32>
    %204 = arith.addf %200, %203 : vector<8x128xf32>
    %205 = arith.mulf %192, %192 : vector<1x128xf32>
    %206 = vector.broadcast %205 : vector<1x128xf32> to vector<8x128xf32>
    %207 = arith.addf %202, %206 : vector<8x128xf32>
    %c7_110 = arith.constant 7 : index
    %208 = memref.load %arg4[%c7_110] : memref<8xf32, #tpu.memory_space<smem>>
    %209 = vector.broadcast %208 : f32 to vector<8x128xf32>
    %210 = arith.mulf %209, %207 : vector<8x128xf32>
    %211 = arith.addf %189, %210 : vector<8x128xf32>
    %c7_111 = arith.constant 7 : index
    %212 = memref.load %arg5[%c7_111] : memref<8xf32, #tpu.memory_space<smem>>
    %213 = arith.mulf %204, %204 : vector<8x128xf32>
    %214 = vector.broadcast %212 : f32 to vector<8x128xf32>
    %215 = arith.mulf %214, %213 : vector<8x128xf32>
    %216 = arith.subf %211, %215 : vector<8x128xf32>
    %c0_112 = arith.constant 0 : index
    %217 = memref.load %arg6[%c0_112] : memref<1xf32, #tpu.memory_space<smem>>
    %218 = vector.broadcast %217 : f32 to vector<8x128xf32>
    %219 = arith.addf %216, %218 : vector<8x128xf32>
    %cst_113 = arith.constant dense<0xFF800000> : vector<128xf32>
    %220 = vector.multi_reduction <maximumf>, %219, %cst_113 [0] : vector<8x128xf32> to vector<128xf32>
    %221 = vector.shape_cast %220 : vector<128xf32> to vector<1x128xf32>
    %222 = vector.broadcast %221 : vector<1x128xf32> to vector<8x128xf32>
    %223 = arith.subf %219, %222 : vector<8x128xf32>
    %224 = math.exp %223 : vector<8x128xf32>
    %cst_114 = arith.constant dense<0.000000e+00> : vector<128xf32>
    %225 = vector.multi_reduction <add>, %224, %cst_114 [0] : vector<8x128xf32> to vector<128xf32>
    %226 = vector.shape_cast %225 : vector<128xf32> to vector<1x128xf32>
    %227 = tpu.reciprocal %226 {approx = true} : vector<1x128xf32> -> vector<1x128xf32>
    %228 = vector.broadcast %227 : vector<1x128xf32> to vector<8x128xf32>
    %229 = arith.mulf %224, %228 : vector<8x128xf32>
    %c0_115 = arith.constant 0 : index
    %c0_116 = arith.constant 0 : index
    %c0_117 = arith.constant 0 : index
    %230 = vector.load %arg8[%c0_115, %c0_116, %c0_117] : memref<1x8x128xf32, #tpu.memory_space<vmem>>, vector<1x8x128xf32>
    %231 = vector.shape_cast %230 : vector<1x8x128xf32> to vector<8x128xf32>
    %232 = vector.shape_cast %229 : vector<8x128xf32> to vector<1x8x128xf32>
    tpu.vector_store %arg8[%c0_115, %c0_116, %c0_117], %232 {strides = array<i32>} : memref<1x8x128xf32, #tpu.memory_space<vmem>>, vector<1x8x128xf32>,
    %c0_118 = arith.constant 0 : index
    %c0_119 = arith.constant 0 : index
    %c0_120 = arith.constant 0 : index
    %233 = vector.load %arg7[%c0_118, %c0_119, %c0_120] : memref<1x8x1xf32, #tpu.memory_space<vmem>>, vector<1x8x1xf32>
    %234 = vector.shape_cast %233 : vector<1x8x1xf32> to vector<8x1xf32>
    %235 = vector.broadcast %234 : vector<8x1xf32> to vector<8x128xf32>
    %236 = arith.mulf %229, %235 : vector<8x128xf32>
    %cst_121 = arith.constant dense<0.000000e+00> : vector<128xf32>
    %237 = vector.multi_reduction <add>, %236, %cst_121 [0] : vector<8x128xf32> to vector<128xf32>
    %238 = vector.shape_cast %237 : vector<128xf32> to vector<1x128xf32>
    %c0_122 = arith.constant 0 : index
    %c0_123 = arith.constant 0 : index
    %c0_124 = arith.constant 0 : index
    %239 = vector.load %arg9[%c0_122, %c0_123, %c0_124] : memref<1x1x128xf32, #tpu.memory_space<vmem>>, vector<1x1x128xf32>
    %240 = vector.shape_cast %239 : vector<1x1x128xf32> to vector<1x128xf32>
    %241 = vector.shape_cast %238 : vector<1x128xf32> to vector<1x1x128xf32>
    tpu.vector_store %arg9[%c0_122, %c0_123, %c0_124], %241 {strides = array<i32>} : memref<1x1x128xf32, #tpu.memory_space<vmem>>, vector<1x1x128xf32>,
    %242 = tpu.iota {dimensions = array<i32: 0>} : vector<8x128xi32>
    %243 = arith.sitofp %242 : vector<8x128xi32> to vector<8x128xf32>
    %244 = arith.mulf %229, %243 : vector<8x128xf32>
    %cst_125 = arith.constant dense<0.000000e+00> : vector<128xf32>
    %245 = vector.multi_reduction <add>, %244, %cst_125 [0] : vector<8x128xf32> to vector<128xf32>
    %246 = vector.shape_cast %245 : vector<128xf32> to vector<1x128xf32>
    %247 = arith.fptosi %246 : vector<1x128xf32> to vector<1x128xi32>
    %c0_i32 = arith.constant 0 : i32
    %c7_i32 = arith.constant 7 : i32
    %248 = vector.broadcast %c0_i32 : i32 to vector<1x128xi32>
    %249 = arith.maxsi %248, %247 : vector<1x128xi32>
    %250 = vector.broadcast %c7_i32 : i32 to vector<1x128xi32>
    %251 = arith.minsi %250, %249 : vector<1x128xi32>
    %c1_i32 = arith.constant 1 : i32
    %252 = vector.broadcast %c1_i32 : i32 to vector<1x128xi32>
    %253 = arith.subi %251, %252 : vector<1x128xi32>
    %254 = vector.broadcast %253 : vector<1x128xi32> to vector<8x128xi32>
    %255 = arith.cmpi sge, %242, %254 : vector<8x128xi32>
    %c2_i32 = arith.constant 2 : i32
    %256 = vector.broadcast %c2_i32 : i32 to vector<1x128xi32>
    %257 = arith.addi %251, %256 : vector<1x128xi32>
    %258 = vector.broadcast %257 : vector<1x128xi32> to vector<8x128xi32>
    %259 = arith.cmpi sle, %242, %258 : vector<8x128xi32>
    %260 = arith.andi %255, %259 : vector<8x128xi1>
    %cst_126 = arith.constant 0.000000e+00 : f32
    %261 = vector.broadcast %cst_126 : f32 to vector<8x128xf32>
    %262 = arith.select %260, %229, %261 : vector<8x128xi1>, vector<8x128xf32>
    %cst_127 = arith.constant dense<0.000000e+00> : vector<128xf32>
    %263 = vector.multi_reduction <add>, %262, %cst_127 [0] : vector<8x128xf32> to vector<128xf32>
    %264 = vector.shape_cast %263 : vector<128xf32> to vector<1x128xf32>
    %c0_128 = arith.constant 0 : index
    %c0_129 = arith.constant 0 : index
    %c0_130 = arith.constant 0 : index
    %265 = vector.load %arg10[%c0_128, %c0_129, %c0_130] : memref<1x1x128xf32, #tpu.memory_space<vmem>>, vector<1x1x128xf32>
    %266 = vector.shape_cast %265 : vector<1x1x128xf32> to vector<1x128xf32>
    %267 = vector.shape_cast %264 : vector<1x128xf32> to vector<1x1x128xf32>
    tpu.vector_store %arg10[%c0_128, %c0_129, %c0_130], %267 {strides = array<i32>} : memref<1x1x128xf32, #tpu.memory_space<vmem>>, vector<1x1x128xf32>,
    return
  }
  func.func @transform_0(%arg0: i32, %arg1: i32) -> (i32, i32, i32, i32, i32) {
    %c0_i32 = arith.constant 0 : i32
    %c0_i32_0 = arith.constant 0 : i32
    %c0_i32_1 = arith.constant 0 : i32
    %c0_i32_2 = arith.constant 0 : i32
    return %c0_i32, %arg1, %c0_i32_0, %c0_i32_1, %arg0 : i32, i32, i32, i32, i32
  }
  func.func @transform_1(%arg0: i32, %arg1: i32) -> (i32, i32, i32) {
    %c0_i32 = arith.constant 0 : i32
    %c0_i32_0 = arith.constant 0 : i32
    return %arg1, %c0_i32, %arg0 : i32, i32, i32
  }
  func.func @transform_2(%arg0: i32, %arg1: i32) -> i32 {
    %c0_i32 = arith.constant 0 : i32
    %c0_i32_0 = arith.constant 0 : i32
    return %c0_i32 : i32
  }
  func.func @transform_3(%arg0: i32, %arg1: i32) -> i32 {
    %c0_i32 = arith.constant 0 : i32
    %c0_i32_0 = arith.constant 0 : i32
    return %c0_i32 : i32
  }
  func.func @transform_4(%arg0: i32, %arg1: i32) -> i32 {
    %c0_i32 = arith.constant 0 : i32
    %c0_i32_0 = arith.constant 0 : i32
    return %c0_i32 : i32
  }
  func.func @transform_5(%arg0: i32, %arg1: i32) -> (i32, i32, i32) {
    %c0_i32 = arith.constant 0 : i32
    %c0_i32_0 = arith.constant 0 : i32
    %c0_i32_1 = arith.constant 0 : i32
    return %arg1, %c0_i32, %c0_i32_0 : i32, i32, i32
  }
  func.func @transform_6(%arg0: i32, %arg1: i32) -> (i32, i32, i32) {
    %c0_i32 = arith.constant 0 : i32
    %c0_i32_0 = arith.constant 0 : i32
    return %arg1, %c0_i32, %arg0 : i32, i32, i32
  }
  func.func @transform_7(%arg0: i32, %arg1: i32) -> (i32, i32, i32) {
    %c0_i32 = arith.constant 0 : i32
    %c0_i32_0 = arith.constant 0 : i32
    return %arg1, %c0_i32, %arg0 : i32, i32, i32
  }
  func.func @transform_8(%arg0: i32, %arg1: i32) -> (i32, i32, i32) {
    %c0_i32 = arith.constant 0 : i32
    %c0_i32_0 = arith.constant 0 : i32
    return %arg1, %c0_i32, %arg0 : i32, i32, i32
  }
}

</mosaic_0001>

<llo_original>
// kernel: tpu_custom_call.1
$region0: #{tpu_custom_call.1}
  #allocation0 [shape = 'u32[]', space=smem, size = 0x4, offset = 0x4, fixed_abs, tag = 'smem constant byte address 0x4 - core index']
  #allocation1 [shape = 'u32[144,128]{1,0:T(1,128)}', space=vmem, size = 0x12000, scoped, tag = 'internal scratch']
  #allocation2 [shape = 'f32[1]{0:T(128)S(6)}', space=smem, size = 0x200, scoped, tag = 'scoped memory for tpu_custom_call.1']
  #allocation14 [shape = 's32[]', space=sflag, size = 0x4, offset = 0, fixed_abs, tag = 'sflag constant byte address 0x0 - dummy sync flag']
  %s0 = inlined_call_operand.hbm [shape: bf16[2,2,8,8,256], index: 0, kind: input, shape index: {}]
  %s1 = inlined_call_operand.vmem [shape: bf16[2,8,256], index: 1, kind: input, shape index: {}]
  %s2 = inlined_call_operand.vmem [shape: f32[8], index: 2, kind: input, shape index: {}]
  %s3 = inlined_call_operand.vmem [shape: f32[8], index: 3, kind: input, shape index: {}]
  %s4 = inlined_call_operand.<no memory space> [shape: f32[1], index: 4, kind: input, shape index: {}]
  %s5 = inlined_call_operand.vmem [shape: f32[2,8,1], index: 5, kind: input, shape index: {}]
  %s6 = inlined_call_operand.hbm [shape: f32[2,8,256], index: 6, kind: output, shape index: {0}]
  %s7 = inlined_call_operand.hbm [shape: f32[2,1,256], index: 7, kind: output, shape index: {1}]
  %s8 = inlined_call_operand.hbm [shape: f32[2,1,256], index: 8, kind: output, shape index: {2}]
  %9 = xla_tuple %s6, %s7, %s8
  %s10 = sld [smem:[#allocation0]]
  $region85: #{tpu_custom_call.1} parent=0
    _
  %s12 = ssub.s32 1, %s10
  %s13 = scalar_select 0, %s12, %s10
  %14 = sst [smem:[#allocation2]] %s4
  $region1: #{tpu_custom_call.1} parent=0
    #allocation3 [shape = 'u8[65536]{0}', space=vmem, size = 0x10000, scoped, tag = 'input window, operand 0']
    #allocation4 [shape = 's32[2]{0}', space=sflag, size = 0x8, scoped, tag = 'scoped memory for tpu_custom_call.1']
    #allocation5 [shape = 's32[2]{0}', space=sflag, size = 0x8, scoped, tag = 'scoped memory for tpu_custom_call.1']
    #allocation6 [shape = 's32[2]{0}', space=sflag, size = 0x8, scoped, tag = 'scoped memory for tpu_custom_call.1']
    #allocation7 [shape = 'u8[512]{0}', space=smem, size = 0x200, scoped, tag = 'input window, operand 2, single buffered']
    #allocation8 [shape = 'u8[512]{0}', space=smem, size = 0x200, scoped, tag = 'input window, operand 3, single buffered']
    #allocation9 [shape = 's32[1]{0}', space=sflag, size = 0x4, scoped, tag = 'scoped memory for tpu_custom_call.1']
    #allocation10 [shape = 'u8[8192]{0}', space=vmem, size = 0x2000, scoped, tag = 'output window, operand 0']
    #allocation11 [shape = 'u8[1024]{0}', space=vmem, size = 0x400, scoped, tag = 'output window, operand 1']
    #allocation12 [shape = 's32[2]{0}', space=sflag, size = 0x8, scoped, tag = 'scoped memory for tpu_custom_call.1']
    #allocation13 [shape = 'u8[1024]{0}', space=vmem, size = 0x400, scoped, tag = 'output window, operand 2']
    %15 = vsyncpa [#allocation4], 0
    %s16 = scalar_lea.sflag [#allocation4], 1
    %17 = vsyncpa %s16, 0
    %18 = vsyncpa [#allocation6], 0
    %19 = vsyncpa [#allocation9], 0
    %20 = vsyncpa [#allocation5], 0
    %s21 = scalar_lea.sflag [#allocation5], 1
    %22 = vsyncpa %s21, 0
    %23 = vsyncpa [#allocation12], 0
    %s24 = scalar_lea.sflag [#allocation12], 1
    %25 = vsyncpa %s24, 0
    loop: start=0, step=1, limit=6
    $region2: #{tpu_custom_call.1} parent=1 // loop_pre_header
      _
    $region3: #{tpu_custom_call.1} parent=1 // loop_header
      %s27 = sphi 0, %s31
      %p28 = scmp.ge.s32.totalorder %s27, 6
      %s34 = sphi 0, %s46
      %s35 = sphi 0, %s42
      %s36 = sphi 0, %s34
      %s37 = sphi 0, %s35
      %s38 = sphi 0, %s36
      %s39 = sphi 0, %s37
      %s51 = sphi 0, %s53
      %s54 = sphi 0, %s51
      %s55 = sphi 0, %s54
      %s71 = sphi 0, %s55
      %s79 = sphi 0, %s81
      %s82 = sphi 0, %s79
      %s83 = sphi 0, %s82
      %s99 = sphi 0, %s83
      %s103 = sphi 0, %s103
      %s105 = sphi 0, %s103
      %s106 = sphi 0, %s105
      %s120 = sphi 0, %s106
      %s124 = sphi 0, %s124
      %s126 = sphi 0, %s124
      %s127 = sphi 0, %s126
      %s141 = sphi 0, %s127
      %s145 = sphi 0, %s145
      %s147 = sphi 0, %s145
      %s148 = sphi 0, %s147
      %s162 = sphi 0, %s148
      %s168 = sphi 0, %s170
      %s171 = sphi 0, %s168
      %s172 = sphi 0, %s171
      %s188 = sphi 0, %s172
      %s196 = sphi 0, %s198
      %s199 = sphi 0, %s196
      %s200 = sphi 0, %s199
      %s216 = sphi 0, %s200
      %s224 = sphi 0, %s226
      %s227 = sphi 0, %s224
      %s228 = sphi 0, %s227
      %s244 = sphi 0, %s228
      %s252 = sphi 0, %s254
      %s255 = sphi 0, %s252
      %s256 = sphi 0, %s255
      %s272 = sphi 0, %s256
    $region4: #{tpu_custom_call.1} parent=1 // loop_header_branch
      %30 = sbr.rel (%p28) target = $region8
    $region5: #{tpu_custom_call.1} parent=1 // loop_body
      %s32 = ssub.s32 %s27, 1
      %s33 = ssub.s32 %s27, 2
      %s40 = sadd.s32 1, %s35
      %p41 = scmp.ge.s32.totalorder %s40, 2
      %s42 = scalar_select %p41, 0, %s40
      %s43 = sadd.s32 1, %s34
      %s44 = scalar_select %p41, %s43, %s34
      %p45 = scmp.ge.s32.totalorder %s44, 2
      %s46 = scalar_select %p45, 0, %s44
      %s47 = ssub.s32 %s35, %s42
      %s48 = ssub.s32 %s34, %s46
      %s49 = sor.u32 %s47, %s48
      %p50 = scmp.eq.s32.totalorder %s49, 0
      %s52 = sadd.s32 %s51, 1
      %s53 = scalar_select %p50, %s51, %s52
      %p56 = pneg %p50
      %p57 = scmp.eq.s32.totalorder %s27, 3
      %p58 = por %p56, %p57
      %p59 = scmp.ne.s32.totalorder %s51, %s54
      %p60 = scmp.eq.s32.totalorder %s27, 0
      %p61 = por %p59, %p60
      %p62 = scmp.ne.s32.totalorder %s51, %s54
      %p63 = scmp.eq.s32.totalorder %s32, 3
      %p64 = por %p62, %p63
      %p65 = scmp.ne.s32.totalorder %s54, %s55
      %p66 = scmp.eq.s32.totalorder %s32, 0
      %p67 = por %p65, %p66
      %p68 = scmp.ne.s32.totalorder %s54, %s55
      %p69 = scmp.eq.s32.totalorder %s33, 3
      %p70 = por %p68, %p69
      %p72 = scmp.ne.s32.totalorder %s55, %s71
      %p73 = scmp.eq.s32.totalorder %s33, 0
      %p74 = por %p72, %p73
      %s75 = ssub.s32 %s35, %s42
      %s76 = ssub.s32 %s34, %s46
      %s77 = sor.u32 %s75, %s76
      %p78 = scmp.eq.s32.totalorder %s77, 0
      %s80 = sadd.s32 %s79, 1
      %s81 = scalar_select %p78, %s79, %s80
      %p84 = pneg %p78
      %p85 = scmp.eq.s32.totalorder %s27, 3
      %p86 = por %p84, %p85
      %p87 = scmp.ne.s32.totalorder %s79, %s82
      %p88 = scmp.eq.s32.totalorder %s27, 0
      %p89 = por %p87, %p88
      %p90 = scmp.ne.s32.totalorder %s79, %s82
      %p91 = scmp.eq.s32.totalorder %s32, 3
      %p92 = por %p90, %p91
      %p93 = scmp.ne.s32.totalorder %s82, %s83
      %p94 = scmp.eq.s32.totalorder %s32, 0
      %p95 = por %p93, %p94
      %p96 = scmp.ne.s32.totalorder %s82, %s83
      %p97 = scmp.eq.s32.totalorder %s33, 3
      %p98 = por %p96, %p97
      %p100 = scmp.ne.s32.totalorder %s83, %s99
      %p101 = scmp.eq.s32.totalorder %s33, 0
      %p102 = por %p100, %p101
      %s104 = sadd.s32 %s103, 1
      %p107 = scmp.eq.s32.totalorder %s27, 3
      %p108 = scmp.ne.s32.totalorder %s103, %s105
      %p109 = scmp.eq.s32.totalorder %s27, 0
      %p110 = por %p108, %p109
      %p111 = scmp.ne.s32.totalorder %s103, %s105
      %p112 = scmp.eq.s32.totalorder %s32, 3
      %p113 = por %p111, %p112
      %p114 = scmp.ne.s32.totalorder %s105, %s106
      %p115 = scmp.eq.s32.totalorder %s32, 0
      %p116 = por %p114, %p115
      %p117 = scmp.ne.s32.totalorder %s105, %s106
      %p118 = scmp.eq.s32.totalorder %s33, 3
      %p119 = por %p117, %p118
      %p121 = scmp.ne.s32.totalorder %s106, %s120
      %p122 = scmp.eq.s32.totalorder %s33, 0
      %p123 = por %p121, %p122
      %s125 = sadd.s32 %s124, 1
      %p128 = scmp.eq.s32.totalorder %s27, 3
      %p129 = scmp.ne.s32.totalorder %s124, %s126
      %p130 = scmp.eq.s32.totalorder %s27, 0
      %p131 = por %p129, %p130
      %p132 = scmp.ne.s32.totalorder %s124, %s126
      %p133 = scmp.eq.s32.totalorder %s32, 3
      %p134 = por %p132, %p133
      %p135 = scmp.ne.s32.totalorder %s126, %s127
      %p136 = scmp.eq.s32.totalorder %s32, 0
      %p137 = por %p135, %p136
      %p138 = scmp.ne.s32.totalorder %s126, %s127
      %p139 = scmp.eq.s32.totalorder %s33, 3
      %p140 = por %p138, %p139
      %p142 = scmp.ne.s32.totalorder %s127, %s141
      %p143 = scmp.eq.s32.totalorder %s33, 0
      %p144 = por %p142, %p143
      %s146 = sadd.s32 %s145, 1
      %p149 = scmp.eq.s32.totalorder %s27, 3
      %p150 = scmp.ne.s32.totalorder %s145, %s147
      %p151 = scmp.eq.s32.totalorder %s27, 0
      %p152 = por %p150, %p151
      %p153 = scmp.ne.s32.totalorder %s145, %s147
      %p154 = scmp.eq.s32.totalorder %s32, 3
      %p155 = por %p153, %p154
      %p156 = scmp.ne.s32.totalorder %s147, %s148
      %p157 = scmp.eq.s32.totalorder %s32, 0
      %p158 = por %p156, %p157
      %p159 = scmp.ne.s32.totalorder %s147, %s148
      %p160 = scmp.eq.s32.totalorder %s33, 3
      %p161 = por %p159, %p160
      %p163 = scmp.ne.s32.totalorder %s148, %s162
      %p164 = scmp.eq.s32.totalorder %s33, 0
      %p165 = por %p163, %p164
      %s166 = ssub.s32 %s35, %s42
      %p167 = scmp.eq.s32.totalorder %s166, 0
      %s169 = sadd.s32 %s168, 1
      %s170 = scalar_select %p167, %s168, %s169
      %p173 = pneg %p167
      %p174 = scmp.eq.s32.totalorder %s27, 3
      %p175 = por %p173, %p174
      %p176 = scmp.ne.s32.totalorder %s168, %s171
      %p177 = scmp.eq.s32.totalorder %s27, 0
      %p178 = por %p176, %p177
      %p179 = scmp.ne.s32.totalorder %s168, %s171
      %p180 = scmp.eq.s32.totalorder %s32, 3
      %p181 = por %p179, %p180
      %p182 = scmp.ne.s32.totalorder %s171, %s172
      %p183 = scmp.eq.s32.totalorder %s32, 0
      %p184 = por %p182, %p183
      %p185 = scmp.ne.s32.totalorder %s171, %s172
      %p186 = scmp.eq.s32.totalorder %s33, 3
      %p187 = por %p185, %p186
      %p189 = scmp.ne.s32.totalorder %s172, %s188
      %p190 = scmp.eq.s32.totalorder %s33, 0
      %p191 = por %p189, %p190
      %s192 = ssub.s32 %s35, %s42
      %s193 = ssub.s32 %s34, %s46
      %s194 = sor.u32 %s192, %s193
      %p195 = scmp.eq.s32.totalorder %s194, 0
      %s197 = sadd.s32 %s196, 1
      %s198 = scalar_select %p195, %s196, %s197
      %p201 = pneg %p195
      %p202 = scmp.eq.s32.totalorder %s27, 3
      %p203 = por %p201, %p202
      %p204 = scmp.ne.s32.totalorder %s196, %s199
      %p205 = scmp.eq.s32.totalorder %s27, 0
      %p206 = por %p204, %p205
      %p207 = scmp.ne.s32.totalorder %s196, %s199
      %p208 = scmp.eq.s32.totalorder %s32, 3
      %p209 = por %p207, %p208
      %p210 = scmp.ne.s32.totalorder %s199, %s200
      %p211 = scmp.eq.s32.totalorder %s32, 0
      %p212 = por %p210, %p211
      %p213 = scmp.ne.s32.totalorder %s199, %s200
      %p214 = scmp.eq.s32.totalorder %s33, 3
      %p215 = por %p213, %p214
      %p217 = scmp.ne.s32.totalorder %s200, %s216
      %p218 = scmp.eq.s32.totalorder %s33, 0
      %p219 = por %p217, %p218
      %s220 = ssub.s32 %s35, %s42
      %s221 = ssub.s32 %s34, %s46
      %s222 = sor.u32 %s220, %s221
      %p223 = scmp.eq.s32.totalorder %s222, 0
      %s225 = sadd.s32 %s224, 1
      %s226 = scalar_select %p223, %s224, %s225
      %p229 = pneg %p223
      %p230 = scmp.eq.s32.totalorder %s27, 3
      %p231 = por %p229, %p230
      %p232 = scmp.ne.s32.totalorder %s224, %s227
      %p233 = scmp.eq.s32.totalorder %s27, 0
      %p234 = por %p232, %p233
      %p235 = scmp.ne.s32.totalorder %s224, %s227
      %p236 = scmp.eq.s32.totalorder %s32, 3
      %p237 = por %p235, %p236
      %p238 = scmp.ne.s32.totalorder %s227, %s228
      %p239 = scmp.eq.s32.totalorder %s32, 0
      %p240 = por %p238, %p239
      %p241 = scmp.ne.s32.totalorder %s227, %s228
      %p242 = scmp.eq.s32.totalorder %s33, 3
      %p243 = por %p241, %p242
      %p245 = scmp.ne.s32.totalorder %s228, %s244
      %p246 = scmp.eq.s32.totalorder %s33, 0
      %p247 = por %p245, %p246
      %s248 = ssub.s32 %s35, %s42
      %s249 = ssub.s32 %s34, %s46
      %s250 = sor.u32 %s248, %s249
      %p251 = scmp.eq.s32.totalorder %s250, 0
      %s253 = sadd.s32 %s252, 1
      %s254 = scalar_select %p251, %s252, %s253
      %p257 = pneg %p251
      %p258 = scmp.eq.s32.totalorder %s27, 3
      %p259 = por %p257, %p258
      %p260 = scmp.ne.s32.totalorder %s252, %s255
      %p261 = scmp.eq.s32.totalorder %s27, 0
      %p262 = por %p260, %p261
      %p263 = scmp.ne.s32.totalorder %s252, %s255
      %p264 = scmp.eq.s32.totalorder %s32, 3
      %p265 = por %p263, %p264
      %p266 = scmp.ne.s32.totalorder %s255, %s256
      %p267 = scmp.eq.s32.totalorder %s32, 0
      %p268 = por %p266, %p267
      %p269 = scmp.ne.s32.totalorder %s255, %s256
      %p270 = scmp.eq.s32.totalorder %s33, 3
      %p271 = por %p269, %p270
      %p273 = scmp.ne.s32.totalorder %s256, %s272
      %p274 = scmp.eq.s32.totalorder %s33, 0
      %p275 = por %p273, %p274
      %p276 = scmp.le.s32.totalorder 1, %s27
      %p277 = scmp.lt.s32.totalorder %s27, 5
      %p278 = pnand %p276, %p277
      %p279 = pneg %p278
      // Predicated region
      $region9: #{tpu_custom_call.1} parent=5 // pred_check
        _
      $region10: #{tpu_custom_call.1} parent=5 // pred_check_branch
        %281 = sbr.rel (%p278) target = $region12
      $region11: #{tpu_custom_call.1} parent=5 // pred_region
        %s282 = ssub.s32 %s27, 1
        // Predicated region
        $region13: #{tpu_custom_call.1} parent=11 // pred_check
          %p283 = pneg %p116
        $region14: #{tpu_custom_call.1} parent=11 // pred_check_branch
          %285 = sbr.rel (%p283) target = $region16
        $region15: #{tpu_custom_call.1} parent=11 // pred_region
          %s287 = ssub.s32 16, 16
          %288 = vsyncadd [#allocation6], %s287
          %s290 = sshll.u32 %s2, 4
          %s291 = int_to_ptr.vmem [resolvable:$true] %s290
          %293 = dma.vmem_to_smem %s291, 16, [#allocation7], [#allocation6]
        $region16: #{tpu_custom_call.1} parent=11 // pred_fallthru
          _
        // Predicated region
        $region17: #{tpu_custom_call.1} parent=11 // pred_check
          %p294 = pneg %p137
        $region18: #{tpu_custom_call.1} parent=11 // pred_check_branch
          %296 = sbr.rel (%p294) target = $region20
        $region19: #{tpu_custom_call.1} parent=11 // pred_region
          %s298 = ssub.s32 16, 16
          %299 = vsyncadd [#allocation9], %s298
          %s301 = sshll.u32 %s3, 4
          %s302 = int_to_ptr.vmem [resolvable:$true] %s301
          %304 = dma.vmem_to_smem %s302, 16, [#allocation8], [#allocation9]
        $region20: #{tpu_custom_call.1} parent=11 // pred_fallthru
          _
        // Predicated region
        $region21: #{tpu_custom_call.1} parent=11 // pred_check
          %p305 = pneg %p158
        $region22: #{tpu_custom_call.1} parent=11 // pred_check_branch
          %307 = sbr.rel (%p305) target = $region24
        $region23: #{tpu_custom_call.1} parent=11 // pred_region
          _
        $region24: #{tpu_custom_call.1} parent=11 // pred_fallthru
          _
      $region12: #{tpu_custom_call.1} parent=5 // pred_fallthru
        _
      %p308 = scmp.lt.s32.totalorder %s27, 4
      // Predicated region
      $region25: #{tpu_custom_call.1} parent=5 // pred_check
        %p309 = pneg %p308
      $region26: #{tpu_custom_call.1} parent=5 // pred_check_branch
        %311 = sbr.rel (%p309) target = $region28
      $region27: #{tpu_custom_call.1} parent=5 // pred_region
        // Predicated region
        $region29: #{tpu_custom_call.1} parent=27 // pred_check
          %p312 = pneg %p61
        $region30: #{tpu_custom_call.1} parent=27 // pred_check_branch
          %314 = sbr.rel (%p312) target = $region32
        $region31: #{tpu_custom_call.1} parent=27 // pred_region
          #allocation15 [shape = 'u32[6]{0}', space=smem, size = 0x18, scoped, tag = 'DMA stride descriptor']
          %s315 = sand.u32 %s51, 1
          %s316 = scalar_lea.sflag [#allocation4], %s315
          %s317 = sand.u32 %s51, 1
          %s318 = smul.addr %s317, 64
          %s319 = scalar_lea.vmem [#allocation3], %s318
          %s321 = ssub.s32 1024, 1024
          %322 = vsyncadd %s316, %s321
          %s323 = smul.addr %s35, 16
          %s324 = sadd.s32 %s34, %s323
          %s325 = smul.addr %s324, 64
          %s326 = scalar_lea.hbm %s0, %s325
          %s328 = sshll.u32 1, 14
          %s329 = sxor.u32 4294967295, %s328
          %s331 = sld [smem:[#allocation0]]
          %s332 = sadd.s32 2, %s331
          %s334 = sshll.u32 7, 26
          %s335 = sxor.u32 4294967295, %s334
          %s336 = sand.u32 0, %s335
          %s337 = sshll.u32 %s332, 26
          %s338 = sor.u32 %s336, %s337
          %s339 = sshll.u32 %s319, 4
          %s340 = int_to_ptr.vmem [resolvable:$true] %s339
          %346 = sst [smem:[#allocation15]] 2048
          %s347 = scalar_lea.smem [#allocation15], 1
          %348 = sst [smem:[%s347]] 512
          %s349 = scalar_lea.smem [#allocation15], 2
          %350 = sst [smem:[%s349]] 8
          %s351 = scalar_lea.smem [#allocation15], 3
          %352 = sst [smem:[%s351]] 128
          %s353 = scalar_lea.smem [#allocation15], 4
          %354 = sst [smem:[%s353]] 64
          %s355 = scalar_lea.smem [#allocation15], 5
          %356 = sst [smem:[%s355]] 4
          %358 = dma.general %s326, 1024, %s340, %s316, [#allocation14], [#allocation15], %s338, 0
        $region32: #{tpu_custom_call.1} parent=27 // pred_fallthru
          _
        // Predicated region
        $region33: #{tpu_custom_call.1} parent=27 // pred_check
          %p359 = pneg %p89
        $region34: #{tpu_custom_call.1} parent=27 // pred_check_branch
          %361 = sbr.rel (%p359) target = $region36
        $region35: #{tpu_custom_call.1} parent=27 // pred_region
          %p362 = scmp.lt.s32.totalorder %s35, 1
          %s363 = scalar_select %p362, %s35, 1
          %p364 = scmp.lt.s32.totalorder %s34, 1
          %s365 = scalar_select %p364, %s34, 1
          %s366 = smul.addr %s363, 2
          %s367 = sadd.s32 %s365, %s366
          %s368 = smul.addr %s367, 4
          %s369 = scalar_lea.vmem %s1, %s368
        $region36: #{tpu_custom_call.1} parent=27 // pred_fallthru
          _
        // Predicated region
        $region37: #{tpu_custom_call.1} parent=27 // pred_check
          %p370 = pneg %p178
        $region38: #{tpu_custom_call.1} parent=27 // pred_check_branch
          %372 = sbr.rel (%p370) target = $region40
        $region39: #{tpu_custom_call.1} parent=27 // pred_region
          %p373 = scmp.lt.s32.totalorder %s35, 1
          %s374 = scalar_select %p373, %s35, 1
          %s375 = smul.addr %s374, 8
          %s376 = scalar_lea.vmem %s5, %s375
        $region40: #{tpu_custom_call.1} parent=27 // pred_fallthru
          _
      $region28: #{tpu_custom_call.1} parent=5 // pred_fallthru
        _
      %p377 = scmp.le.s32.totalorder 1, %s27
      %p378 = scmp.lt.s32.totalorder %s27, 5
      %p379 = pnand %p377, %p378
      %p380 = pneg %p379
      // Predicated region
      $region41: #{tpu_custom_call.1} parent=5 // pred_check
        _
      $region42: #{tpu_custom_call.1} parent=5 // pred_check_branch
        %382 = sbr.rel (%p379) target = $region44
      $region43: #{tpu_custom_call.1} parent=5 // pred_region
        %s383 = ssub.s32 %s27, 1
        %s384 = sand.u32 %s54, 1
        %s385 = scalar_lea.sflag [#allocation4], %s384
        %s386 = sand.u32 %s54, 1
        %s387 = smul.addr %s386, 64
        %s388 = scalar_lea.vmem [#allocation3], %s387
        // Predicated region
        $region45: #{tpu_custom_call.1} parent=43 // pred_check
          %p389 = pneg %p67
        $region46: #{tpu_custom_call.1} parent=43 // pred_check_branch
          %391 = sbr.rel (%p389) target = $region48
        $region47: #{tpu_custom_call.1} parent=43 // pred_region
          %392 = dma.done %s385, 1024
        $region48: #{tpu_custom_call.1} parent=43 // pred_fallthru
          _
        // Predicated region
        $region49: #{tpu_custom_call.1} parent=43 // pred_check
          %p393 = pneg %p116
        $region50: #{tpu_custom_call.1} parent=43 // pred_check_branch
          %395 = sbr.rel (%p393) target = $region52
        $region51: #{tpu_custom_call.1} parent=43 // pred_region
          %396 = dma.done [#allocation6], 16
        $region52: #{tpu_custom_call.1} parent=43 // pred_fallthru
          _
        // Predicated region
        $region53: #{tpu_custom_call.1} parent=43 // pred_check
          %p397 = pneg %p137
        $region54: #{tpu_custom_call.1} parent=43 // pred_check_branch
          %399 = sbr.rel (%p397) target = $region56
        $region55: #{tpu_custom_call.1} parent=43 // pred_region
          %400 = dma.done [#allocation9], 16
        $region56: #{tpu_custom_call.1} parent=43 // pred_fallthru
          _
        %401 = sfence
        %s402 = sand.u32 %s54, 1
        %s403 = scalar_lea.sflag [#allocation4], %s402
        %s404 = sand.u32 %s54, 1
        %s405 = smul.addr %s404, 64
        %s406 = scalar_lea.vmem [#allocation3], %s405
        %p407 = pneg %p67
        %p408 = pneg %p64
        %p409 = scmp.lt.s32.totalorder %s37, 1
        %s410 = scalar_select %p409, %s37, 1
        %p411 = scmp.lt.s32.totalorder %s36, 1
        %s412 = scalar_select %p411, %s36, 1
        %s413 = smul.addr %s410, 2
        %s414 = sadd.s32 %s412, %s413
        %s415 = smul.addr %s414, 4
        %s416 = scalar_lea.vmem %s1, %s415
        %p417 = pneg %p95
        %p418 = pneg %p92
        %p419 = pneg %p116
        %p420 = pneg %p113
        %p421 = pneg %p137
        %p422 = pneg %p134
        %p423 = pneg %p158
        %p424 = pneg %p155
        %p425 = scmp.lt.s32.totalorder %s37, 1
        %s426 = scalar_select %p425, %s37, 1
        %s427 = smul.addr %s426, 8
        %s428 = scalar_lea.vmem %s5, %s427
        %p429 = pneg %p184
        %p430 = pneg %p181
        %p431 = pneg %p212
        %p432 = pneg %p209
        %s433 = sand.u32 %s199, 1
        %s434 = scalar_lea.sflag [#allocation5], %s433
        %s435 = sand.u32 %s199, 1
        %s436 = smul.addr %s435, 8
        %s437 = scalar_lea.vmem [#allocation10], %s436
        %p438 = pneg %p240
        %p439 = pneg %p237
        %s440 = sand.u32 %s32, 1
        %s441 = scalar_lea.sflag [#allocation12], %s440
        %s442 = sand.u32 %s227, 1
        %s443 = scalar_lea.vmem [#allocation11], %s442
        %p444 = pneg %p268
        %p445 = pneg %p265
        %s446 = sand.u32 %s32, 1
        %s447 = scalar_lea.sflag [#allocation12], %s446
        %s448 = sand.u32 %s255, 1
        %s449 = scalar_lea.vmem [#allocation13], %s448
        %p450 = scmp.lt.s32.totalorder %s37, 1
        %s451 = scalar_select %p450, %s37, 1
        %p452 = scmp.lt.s32.totalorder %s36, 1
        %s453 = scalar_select %p452, %s36, 1
        %s454 = smul.addr %s451, 2
        %s455 = sadd.s32 %s453, %s454
        %s456 = smul.addr %s455, 4
        %s457 = scalar_lea.vmem %s1, %s456
        %p458 = scmp.lt.s32.totalorder %s37, 1
        %s459 = scalar_select %p458, %s37, 1
        %s460 = smul.addr %s459, 8
        %s461 = scalar_lea.vmem %s5, %s460
        %v462 = vld [vmem:[%s457] sm:$0x1]
        %v463 = vunpack.c.l.bf16 %v462
        %v464 = vld [vmem:[%s388] sm:$0xf]
        %v465 = vunpack.c.l.bf16 %v464
        %v466 = vmul.f32 %v465, %v465
        %s467 = scalar_lea.vmem %s388, 32 [#allocation3]
        %v468 = vld [vmem:[%s467] sm:$0xf]
        %v469 = vunpack.c.l.bf16 %v468
        %v470 = vadd.f32 %v465, %v469
        %v471 = vmul.f32 %v469, %v469
        %v472 = vadd.f32 %v466, %v471
        %v473 = vlaneseq
        %v474 = vshrl.u32 %v473, 7
        %v475 = vsub.s32 0, %v474
        %v476 = vrot.slane %v463, %v475
        %v477 = vadd.f32 %v470, %v476
        %v478 = vmul.f32 %v463, %v463
        %v479 = vlaneseq
        %v480 = vshrl.u32 %v479, 7
        %v481 = vsub.s32 0, %v480
        %v482 = vrot.slane %v478, %v481
        %v483 = vadd.f32 %v472, %v482
        %s484 = sld [smem:[#allocation7]]
        %v485 = vstv %s484
        %v486 = vmul.f32 %v485, %v483
        %v487 = vadd.f32 %v486, 0.0
        %s488 = sld [smem:[#allocation8]]
        %v489 = vmul.f32 %v477, %v477
        %v490 = vstv %s488
        %v491 = vmul.f32 %v490, %v489
        %v492 = vsub.f32 %v487, %v491
        %s493 = scalar_lea.vmem %s388, 4 [#allocation3]
        %v494 = vld [vmem:[%s493] sm:$0xf]
        %v495 = vunpack.c.l.bf16 %v494
        %v496 = vmul.f32 %v495, %v495
        %s497 = scalar_lea.vmem %s388, 36 [#allocation3]
        %v498 = vld [vmem:[%s497] sm:$0xf]
        %v499 = vunpack.c.l.bf16 %v498
        %v500 = vadd.f32 %v495, %v499
        %v501 = vmul.f32 %v499, %v499
        %v502 = vadd.f32 %v496, %v501
        %v503 = vlaneseq
        %v504 = vshrl.u32 %v503, 7
        %v505 = vsub.s32 1, %v504
        %v506 = vrot.slane %v463, %v505
        %v507 = vadd.f32 %v500, %v506
        %v508 = vlaneseq
        %v509 = vshrl.u32 %v508, 7
        %v510 = vsub.s32 1, %v509
        %v511 = vrot.slane %v478, %v510
        %v512 = vadd.f32 %v502, %v511
        %s513 = sld [smem:[#allocation7 + $0x1]]
        %v514 = vstv %s513
        %v515 = vmul.f32 %v514, %v512
        %v516 = vadd.f32 %v492, %v515
        %s517 = sld [smem:[#allocation8 + $0x1]]
        %v518 = vmul.f32 %v507, %v507
        %v519 = vstv %s517
        %v520 = vmul.f32 %v519, %v518
        %v521 = vsub.f32 %v516, %v520
        %v522 = vld [vmem:[%s457] sm:$0x2]
        %v523 = vunpack.c.l.bf16 %v522
        %s524 = scalar_lea.vmem %s388, 8 [#allocation3]
        %v525 = vld [vmem:[%s524] sm:$0xf]
        %v526 = vunpack.c.l.bf16 %v525
        %v527 = vmul.f32 %v526, %v526
        %s528 = scalar_lea.vmem %s388, 40 [#allocation3]
        %v529 = vld [vmem:[%s528] sm:$0xf]
        %v530 = vunpack.c.l.bf16 %v529
        %v531 = vadd.f32 %v526, %v530
        %v532 = vmul.f32 %v530, %v530
        %v533 = vadd.f32 %v527, %v532
        %v534 = vlaneseq
        %v535 = vshrl.u32 %v534, 7
        %v536 = vsub.s32 2, %v535
        %v537 = vrot.slane %v523, %v536
        %v538 = vadd.f32 %v531, %v537
        %v539 = vmul.f32 %v523, %v523
        %v540 = vlaneseq
        %v541 = vshrl.u32 %v540, 7
        %v542 = vsub.s32 2, %v541
        %v543 = vrot.slane %v539, %v542
        %v544 = vadd.f32 %v533, %v543
        %s545 = sld [smem:[#allocation7 + $0x2]]
        %v546 = vstv %s545
        %v547 = vmul.f32 %v546, %v544
        %v548 = vadd.f32 %v521, %v547
        %s549 = sld [smem:[#allocation8 + $0x2]]
        %v550 = vmul.f32 %v538, %v538
        %v551 = vstv %s549
        %v552 = vmul.f32 %v551, %v550
        %v553 = vsub.f32 %v548, %v552
        %s554 = scalar_lea.vmem %s388, 12 [#allocation3]
        %v555 = vld [vmem:[%s554] sm:$0xf]
        %v556 = vunpack.c.l.bf16 %v555
        %v557 = vmul.f32 %v556, %v556
        %s558 = scalar_lea.vmem %s388, 44 [#allocation3]
        %v559 = vld [vmem:[%s558] sm:$0xf]
        %v560 = vunpack.c.l.bf16 %v559
        %v561 = vadd.f32 %v556, %v560
        %v562 = vmul.f32 %v560, %v560
        %v563 = vadd.f32 %v557, %v562
        %v564 = vlaneseq
        %v565 = vshrl.u32 %v564, 7
        %v566 = vsub.s32 3, %v565
        %v567 = vrot.slane %v523, %v566
        %v568 = vadd.f32 %v561, %v567
        %v569 = vlaneseq
        %v570 = vshrl.u32 %v569, 7
        %v571 = vsub.s32 3, %v570
        %v572 = vrot.slane %v539, %v571
        %v573 = vadd.f32 %v563, %v572
        %s574 = sld [smem:[#allocation7 + $0x3]]
        %v575 = vstv %s574
        %v576 = vmul.f32 %v575, %v573
        %v577 = vadd.f32 %v553, %v576
        %s578 = sld [smem:[#allocation8 + $0x3]]
        %v579 = vmul.f32 %v568, %v568
        %v580 = vstv %s578
        %v581 = vmul.f32 %v580, %v579
        %v582 = vsub.f32 %v577, %v581
        %v583 = vld [vmem:[%s457] sm:$0x4]
        %v584 = vunpack.c.l.bf16 %v583
        %s585 = scalar_lea.vmem %s388, 16 [#allocation3]
        %v586 = vld [vmem:[%s585] sm:$0xf]
        %v587 = vunpack.c.l.bf16 %v586
        %v588 = vmul.f32 %v587, %v587
        %s589 = scalar_lea.vmem %s388, 48 [#allocation3]
        %v590 = vld [vmem:[%s589] sm:$0xf]
        %v591 = vunpack.c.l.bf16 %v590
        %v592 = vadd.f32 %v587, %v591
        %v593 = vmul.f32 %v591, %v591
        %v594 = vadd.f32 %v588, %v593
        %v595 = vlaneseq
        %v596 = vshrl.u32 %v595, 7
        %v597 = vsub.s32 4, %v596
        %v598 = vrot.slane %v584, %v597
        %v599 = vadd.f32 %v592, %v598
        %v600 = vmul.f32 %v584, %v584
        %v601 = vlaneseq
        %v602 = vshrl.u32 %v601, 7
        %v603 = vsub.s32 4, %v602
        %v604 = vrot.slane %v600, %v603
        %v605 = vadd.f32 %v594, %v604
        %s606 = sld [smem:[#allocation7 + $0x4]]
        %v607 = vstv %s606
        %v608 = vmul.f32 %v607, %v605
        %v609 = vadd.f32 %v582, %v608
        %s610 = sld [smem:[#allocation8 + $0x4]]
        %v611 = vmul.f32 %v599, %v599
        %v612 = vstv %s610
        %v613 = vmul.f32 %v612, %v611
        %v614 = vsub.f32 %v609, %v613
        %s615 = scalar_lea.vmem %s388, 20 [#allocation3]
        %v616 = vld [vmem:[%s615] sm:$0xf]
        %v617 = vunpack.c.l.bf16 %v616
        %v618 = vmul.f32 %v617, %v617
        %s619 = scalar_lea.vmem %s388, 52 [#allocation3]
        %v620 = vld [vmem:[%s619] sm:$0xf]
        %v621 = vunpack.c.l.bf16 %v620
        %v622 = vadd.f32 %v617, %v621
        %v623 = vmul.f32 %v621, %v621
        %v624 = vadd.f32 %v618, %v623
        %v625 = vlaneseq
        %v626 = vshrl.u32 %v625, 7
        %v627 = vsub.s32 5, %v626
        %v628 = vrot.slane %v584, %v627
        %v629 = vadd.f32 %v622, %v628
        %v630 = vlaneseq
        %v631 = vshrl.u32 %v630, 7
        %v632 = vsub.s32 5, %v631
        %v633 = vrot.slane %v600, %v632
        %v634 = vadd.f32 %v624, %v633
        %s635 = sld [smem:[#allocation7 + $0x5]]
        %v636 = vstv %s635
        %v637 = vmul.f32 %v636, %v634
        %v638 = vadd.f32 %v614, %v637
        %s639 = sld [smem:[#allocation8 + $0x5]]
        %v640 = vmul.f32 %v629, %v629
        %v641 = vstv %s639
        %v642 = vmul.f32 %v641, %v640
        %v643 = vsub.f32 %v638, %v642
        %v644 = vld [vmem:[%s457] sm:$0x8]
        %v645 = vunpack.c.l.bf16 %v644
        %s646 = scalar_lea.vmem %s388, 24 [#allocation3]
        %v647 = vld [vmem:[%s646] sm:$0xf]
        %v648 = vunpack.c.l.bf16 %v647
        %v649 = vmul.f32 %v648, %v648
        %s650 = scalar_lea.vmem %s388, 56 [#allocation3]
        %v651 = vld [vmem:[%s650] sm:$0xf]
        %v652 = vunpack.c.l.bf16 %v651
        %v653 = vadd.f32 %v648, %v652
        %v654 = vmul.f32 %v652, %v652
        %v655 = vadd.f32 %v649, %v654
        %v656 = vlaneseq
        %v657 = vshrl.u32 %v656, 7
        %v658 = vsub.s32 6, %v657
        %v659 = vrot.slane %v645, %v658
        %v660 = vadd.f32 %v653, %v659
        %v661 = vmul.f32 %v645, %v645
        %v662 = vlaneseq
        %v663 = vshrl.u32 %v662, 7
        %v664 = vsub.s32 6, %v663
        %v665 = vrot.slane %v661, %v664
        %v666 = vadd.f32 %v655, %v665
        %s667 = sld [smem:[#allocation7 + $0x6]]
        %v668 = vstv %s667
        %v669 = vmul.f32 %v668, %v666
        %v670 = vadd.f32 %v643, %v669
        %s671 = sld [smem:[#allocation8 + $0x6]]
        %v672 = vmul.f32 %v660, %v660
        %v673 = vstv %s671
        %v674 = vmul.f32 %v673, %v672
        %v675 = vsub.f32 %v670, %v674
        %s676 = scalar_lea.vmem %s388, 28 [#allocation3]
        %v677 = vld [vmem:[%s676] sm:$0xf]
        %v678 = vunpack.c.l.bf16 %v677
        %v679 = vmul.f32 %v678, %v678
        %s680 = scalar_lea.vmem %s388, 60 [#allocation3]
        %v681 = vld [vmem:[%s680] sm:$0xf]
        %v682 = vunpack.c.l.bf16 %v681
        %v683 = vadd.f32 %v678, %v682
        %v684 = vmul.f32 %v682, %v682
        %v685 = vadd.f32 %v679, %v684
        %v686 = vlaneseq
        %v687 = vshrl.u32 %v686, 7
        %v688 = vsub.s32 7, %v687
        %v689 = vrot.slane %v645, %v688
        %v690 = vadd.f32 %v683, %v689
        %v691 = vlaneseq
        %v692 = vshrl.u32 %v691, 7
        %v693 = vsub.s32 7, %v692
        %v694 = vrot.slane %v661, %v693
        %v695 = vadd.f32 %v685, %v694
        %s696 = sld [smem:[#allocation7 + $0x7]]
        %v697 = vstv %s696
        %v698 = vmul.f32 %v697, %v695
        %v699 = vadd.f32 %v675, %v698
        %s700 = sld [smem:[#allocation8 + $0x7]]
        %v701 = vmul.f32 %v690, %v690
        %v702 = vstv %s700
        %v703 = vmul.f32 %v702, %v701
        %v704 = vsub.f32 %v699, %v703
        %s705 = sld [smem:[#allocation2]]
        %v706 = vstv %s705
        %v707 = vadd.f32 %v704, %v706
        %v708 = vrot.slane %v707, 4
        %v709 = vmax.f32 %v707, %v708
        %v710 = vrot.slane %v709, 2
        %v711 = vmax.f32 %v709, %v710
        %v712 = vrot.slane %v711, 1
        %v713 = vmax.f32 %v711, %v712
        %v714 = vsub.f32 %v707, %v713
        %v715 = vmul.f32 %v714, 1.442695
        %v716 = vpow.pop %v715
        %v717 = vrot.slane %v716, 4
        %v718 = vadd.f32 %v716, %v717
        %v719 = vrot.slane %v718, 2
        %v720 = vadd.f32 %v718, %v719
        %v721 = vrot.slane %v720, 1
        %v722 = vadd.f32 %v720, %v721
        %v723 = vrcp.pop %v722
        %v724 = vmul.f32 %v716, %v723
        %725 = vst [vmem:[%s437] sm:$0xff] %v724
        %v726 = vld [vmem:[%s461] sm:$0xff]
        %728 = vset.pattern.permute.xlu0 0
        %729 = vperm.xlu0 %728, %v726
        %v730 = vpop.permute.xlu0 %729
        %v732 = vmul.f32 %v724, %v730
        %v733 = vrot.slane %v732, 4
        %v734 = vadd.f32 %v732, %v733
        %v735 = vrot.slane %v734, 2
        %v736 = vadd.f32 %v734, %v735
        %v737 = vrot.slane %v736, 1
        %v738 = vadd.f32 %v736, %v737
        %739 = vst [vmem:[%s443] sm:$0x1] %v738
        %v740 = vlaneseq
        %v741 = vshrl.u32 %v740, 7
        %v742 = vcvt.s32.f32 %v741
        %v743 = vmul.f32 %v724, %v742
        %v744 = vrot.slane %v743, 4
        %v745 = vadd.f32 %v743, %v744
        %v746 = vrot.slane %v745, 2
        %v747 = vadd.f32 %v745, %v746
        %v748 = vrot.slane %v747, 1
        %v749 = vadd.f32 %v747, %v748
        %v750 = vcvt.f32.s32.to.zero.pseudo %v749
        %vm751 = vcmp.gt.s32.totalorder %v750, 0
        %v752 = vsel %vm751, %v750, 0
        %vm753 = vcmp.lt.s32.totalorder %v752, 7
        %v754 = vsel %vm753, %v752, 7
        %v755 = vsub.s32 %v754, 1
        %vm756 = vcmp.ge.s32.totalorder %v741, %v755
        %v757 = vadd.s32 %v754, 2
        %vm758 = vcmp.le.s32.totalorder %v741, %v757
        %vm759 = vmand %vm756, %vm758
        %v760 = vsel %vm759, %v724, 0.0
        %v761 = vrot.slane %v760, 4
        %v762 = vadd.f32 %v760, %v761
        %v763 = vrot.slane %v762, 2
        %v764 = vadd.f32 %v762, %v763
        %v765 = vrot.slane %v764, 1
        %v766 = vadd.f32 %v764, %v765
        %767 = vst [vmem:[%s449] sm:$0x1] %v766
        %s768 = sand.u32 %s199, 1
        %s769 = scalar_lea.sflag [#allocation5], %s768
        %s770 = sand.u32 %s199, 1
        %s771 = smul.addr %s770, 8
        %s772 = scalar_lea.vmem [#allocation10], %s771
        %s773 = sand.u32 %s32, 1
        %s774 = scalar_lea.sflag [#allocation12], %s773
        %s775 = sand.u32 %s227, 1
        %s776 = scalar_lea.vmem [#allocation11], %s775
        %s777 = sand.u32 %s32, 1
        %s778 = scalar_lea.sflag [#allocation12], %s777
        %s779 = sand.u32 %s255, 1
        %s780 = scalar_lea.vmem [#allocation13], %s779
        // Predicated region
        $region57: #{tpu_custom_call.1} parent=43 // pred_check
          %p781 = pneg %p209
        $region58: #{tpu_custom_call.1} parent=43 // pred_check_branch
          %783 = sbr.rel (%p781) target = $region60
        $region59: #{tpu_custom_call.1} parent=43 // pred_region
          %s785 = ssub.s32 128, 128
          %786 = vsyncadd %s769, %s785
          %s787 = smul.addr %s37, 2
          %s788 = sadd.s32 %s36, %s787
          %s789 = smul.addr %s788, 128
          %s790 = scalar_lea.hbm %s6, %s789
          %s792 = sshll.u32 %s772, 4
          %s793 = int_to_ptr.vmem [resolvable:$true] %s792
          %795 = dma.vmem_to_hbm [thread:$0]  %s793, 128, %s790, %s769
        $region60: #{tpu_custom_call.1} parent=43 // pred_fallthru
          _
        // Predicated region
        $region61: #{tpu_custom_call.1} parent=43 // pred_check
          %p796 = pneg %p237
        $region62: #{tpu_custom_call.1} parent=43 // pred_check_branch
          %798 = sbr.rel (%p796) target = $region64
        $region63: #{tpu_custom_call.1} parent=43 // pred_region
          %s800 = ssub.s32 16, 16
          %801 = vsyncadd %s774, %s800
          %s802 = smul.addr %s37, 2
          %s803 = sadd.s32 %s36, %s802
          %s804 = smul.addr %s803, 16
          %s805 = scalar_lea.hbm %s7, %s804
          %s807 = sshll.u32 %s776, 4
          %s808 = int_to_ptr.vmem [resolvable:$true] %s807
          %810 = dma.vmem_to_hbm [thread:$0]  %s808, 16, %s805, %s774
        $region64: #{tpu_custom_call.1} parent=43 // pred_fallthru
          _
        // Predicated region
        $region65: #{tpu_custom_call.1} parent=43 // pred_check
          %p811 = pneg %p265
        $region66: #{tpu_custom_call.1} parent=43 // pred_check_branch
          %813 = sbr.rel (%p811) target = $region68
        $region67: #{tpu_custom_call.1} parent=43 // pred_region
          %s815 = ssub.s32 16, 16
          %816 = vsyncadd %s778, %s815
          %s817 = smul.addr %s37, 2
          %s818 = sadd.s32 %s36, %s817
          %s819 = smul.addr %s818, 16
          %s820 = scalar_lea.hbm %s8, %s819
          %s822 = sshll.u32 %s780, 4
          %s823 = int_to_ptr.vmem [resolvable:$true] %s822
          %825 = dma.vmem_to_hbm [thread:$0]  %s823, 16, %s820, %s778
        $region68: #{tpu_custom_call.1} parent=43 // pred_fallthru
          _
      $region44: #{tpu_custom_call.1} parent=5 // pred_fallthru
        _
      %p826 = scmp.le.s32.totalorder 2, %s27
      // Predicated region
      $region69: #{tpu_custom_call.1} parent=5 // pred_check
        %p827 = pneg %p826
      $region70: #{tpu_custom_call.1} parent=5 // pred_check_branch
        %829 = sbr.rel (%p827) target = $region72
      $region71: #{tpu_custom_call.1} parent=5 // pred_region
        %s830 = ssub.s32 %s27, 2
        // Predicated region
        $region73: #{tpu_custom_call.1} parent=71 // pred_check
          %p831 = pneg %p215
        $region74: #{tpu_custom_call.1} parent=71 // pred_check_branch
          %833 = sbr.rel (%p831) target = $region76
        $region75: #{tpu_custom_call.1} parent=71 // pred_region
          %s834 = sand.u32 %s200, 1
          %s835 = scalar_lea.sflag [#allocation5], %s834
          %s836 = sand.u32 %s200, 1
          %s837 = smul.addr %s836, 8
          %s838 = scalar_lea.vmem [#allocation10], %s837
          %839 = dma.done %s835, 128
        $region76: #{tpu_custom_call.1} parent=71 // pred_fallthru
          _
        // Predicated region
        $region77: #{tpu_custom_call.1} parent=71 // pred_check
          %p840 = pneg %p243
        $region78: #{tpu_custom_call.1} parent=71 // pred_check_branch
          %842 = sbr.rel (%p840) target = $region80
        $region79: #{tpu_custom_call.1} parent=71 // pred_region
          %s843 = sand.u32 %s33, 1
          %s844 = scalar_lea.sflag [#allocation12], %s843
          %s845 = sand.u32 %s228, 1
          %s846 = scalar_lea.vmem [#allocation11], %s845
          %847 = dma.done %s844, 16
        $region80: #{tpu_custom_call.1} parent=71 // pred_fallthru
          _
        // Predicated region
        $region81: #{tpu_custom_call.1} parent=71 // pred_check
          %p848 = pneg %p271
        $region82: #{tpu_custom_call.1} parent=71 // pred_check_branch
          %850 = sbr.rel (%p848) target = $region84
        $region83: #{tpu_custom_call.1} parent=71 // pred_region
          %s851 = sand.u32 %s33, 1
          %s852 = scalar_lea.sflag [#allocation12], %s851
          %s853 = sand.u32 %s256, 1
          %s854 = scalar_lea.vmem [#allocation13], %s853
          %855 = dma.done %s852, 16
        $region84: #{tpu_custom_call.1} parent=71 // pred_fallthru
          _
      $region72: #{tpu_custom_call.1} parent=5 // pred_fallthru
        _
    $region6: #{tpu_custom_call.1} parent=1 // loop_footer
      %s31 = sadd.s32 1, %s27
    $region7: #{tpu_custom_call.1} parent=1 // loop_footer_branch
      %26 = sbr.rel target = $region3
    $region8: #{tpu_custom_call.1} parent=1 // loop_exit
      _
    %856 = vsyncpa [#allocation4], 1
    %s857 = scalar_lea.sflag [#allocation4], 1
    %858 = vsyncpa %s857, 1
    %859 = vsyncpa [#allocation5], 1
    %s860 = scalar_lea.sflag [#allocation5], 1
    %861 = vsyncpa %s860, 1
    %862 = vsyncpa [#allocation12], 1
    %s863 = scalar_lea.sflag [#allocation12], 1
    %864 = vsyncpa %s863, 1
    %865 = vsyncpa [#allocation6], 1
    %s866 = scalar_lea.sflag [#allocation6], 1
    %867 = vsyncpa %s866, 1
    %868 = vsyncpa [#allocation9], 1

</llo_original>
